<compile_context>
chip_gen: v6e
topology: v6e:2x2x1
jax: 0.10.0
libtpu: 0.0.40
codegen_flags: <defaults>
</compile_context>

<pallas_src>
import functools

import jax
import jax.numpy as jnp
from jax import lax
from jax.experimental import pallas as pl
from jax.experimental.pallas import tpu as pltpu

# Explicit scoped-VMEM limit: safe on v5e/v6e (128 MiB physical) and v7x (64 MiB).
_VMEM_LIMIT = 32 * 1024 * 1024


def _reciprocal(x, approx):
    if hasattr(pl, "reciprocal"):
        return pl.reciprocal(x, approx=approx)
    return 1.0 / x


# --------------------------- fused Pallas kernel -----------------------------

def _ectb_kernel(x_ref, w1_ref, b1_ref, wq_ref, bq_ref, wv_ref, bv_ref,
                 bl_ref, w3a_ref, wc_ref, bc_ref, o_ref, y1_ref, *,
                 heads, compute_dtype, approx_recip):
    # x_ref : (1, c1, N) input image.            o_ref : (1, c2, N) ECTB output.
    # w1/b1 : cv1.   wq/bq : sqrt(1/sqrt(C/4)) * startconv (q = k path).
    # wv/bv : blockdiag(lin_w) @ startconv (value path with Linear weight folded in).
    # bl    : Linear bias tiled over heads, shape (c_, 1).
    # w3a   : cv3 weight columns for the CMHSA half.
    # wc/bc : cv2 + concat + cv3 fold:  wc = W3[:, c_:] @ cv2_w,
    #                                   bc = W3[:, c_:] @ cv2_b + cv3_b.
    # y1_ref: (c_, N) VMEM scratch holding y1 = CMHSA(cv1(x)) (never hits HBM).
    cd = compute_dtype

    def mm(a, b):  # MXU matmul: bf16 operands in fast mode, f32 accumulation.
        return jnp.dot(a.astype(cd), b.astype(cd),
                       preferred_element_type=jnp.float32)

    x = x_ref[0]                                  # (c1, N)
    xres = mm(w1_ref[...], x) + b1_ref[...]       # cv1(x): residual + attn input
    yq = mm(wq_ref[...], xres) + bq_ref[...]      # sqrt(scale)-scaled q (= k)
    v2 = mm(wv_ref[...], xres) + bv_ref[...]      # lin_w folded into the value path
    bl = bl_ref[...]                              # (c_, 1)

    cc, _n = xres.shape
    d = cc // heads
    # TODO(synk): the (N, N) attention map is materialized per (batch, head);
    # flash-tile the softmax/InstanceNorm over N for large H*W (v7x 64 MiB VMEM).
    for h in range(heads):                        # static, unrolled loop over heads
        lo, hi = h * d, (h + 1) * d
        yh = yq[lo:hi, :]                         # (d, N)
        # energy = scale * q^T k  (scale pre-folded); contract dim 0 of both operands.
        energy = lax.dot_general(yh.astype(cd), yh.astype(cd),
                                 (((0,), (0,)), ((), ())),
                                 preferred_element_type=jnp.float32)   # (N, N)
        # softmax over the last axis (element-wise math kept in f32).
        m = jnp.max(energy, axis=-1, keepdims=True)
        p = jnp.exp(energy - m)
        attn = p * _reciprocal(jnp.sum(p, axis=-1, keepdims=True), approx_recip)
        # InstanceNorm2d(affine=False): normalize the whole (N, N) map of this head.
        mu = jnp.mean(attn)
        var = jnp.mean((attn - mu) ** 2)
        attn = (attn - mu) * lax.rsqrt(var + 1e-5)
        # out = (lin_w @ v) @ attn^T  -- contract both operands on their last axis.
        vh = v2[lo:hi, :]                         # (d, N)
        out_h = lax.dot_general(vh.astype(cd), attn.astype(cd),
                                (((1,), (1,)), ((), ())),
                                preferred_element_type=jnp.float32)    # (d, N)
        # y1 = attn-out + Linear bias + residual, accumulated in VMEM scratch.
        y1_ref[lo:hi, :] = out_h + bl[lo:hi, :] + xres[lo:hi, :]

    # cv3 with cv2 / concat folded in: single lane-dense full-tile store.
    out = mm(w3a_ref[...], y1_ref[...]) + mm(wc_ref[...], x) + bc_ref[...]
    o_ref[0] = out.astype(o_ref.dtype)


# ------------------------------ ECTB forward --------------------------------

def ectb_forward(x, params, heads=4, compute_dtype=jnp.float32, approx_recip=False):
    B, c1, H, W = x.shape
    c_ = params["cv1_w"].shape[0]
    c2 = params["cv3_w"].shape[0]
    N = H * W
    xf = x.reshape(B, c1, N)            # NCHW-native flatten (contiguous, free)

    # ---- algebraic weight folding (tiny, done once outside the kernel) ----
    scale = 1.0 / float((c_ / 4.0) ** 0.5)
    sqs = float(scale ** 0.5)
    wq = params["start_w"] * sqs
    bq = (params["start_b"] * sqs).reshape(c_, 1)
    w_bd = jnp.kron(jnp.eye(heads, dtype=params["lin_w"].dtype), params["lin_w"])
    wv = w_bd @ params["start_w"]
    bv = (w_bd @ params["start_b"]).reshape(c_, 1)
    bl = jnp.tile(params["lin_b"], heads).reshape(c_, 1)
    w3a = params["cv3_w"][:, :c_]
    w3b = params["cv3_w"][:, c_:]
    wc = w3b @ params["cv2_w"]
    bc = (w3b @ params["cv2_b"] + params["cv3_b"]).reshape(c2, 1)

    # ---- single fused kernel: one grid step per batch image ----
    out = pl.pallas_call(
        functools.partial(_ectb_kernel, heads=heads,
                          compute_dtype=compute_dtype, approx_recip=approx_recip),
        out_shape=jax.ShapeDtypeStruct((B, c2, N), jnp.float32),
        grid=(B,),
        in_specs=[
            pl.BlockSpec((1, c1, N), lambda b: (b, 0, 0)),   # x
            pl.BlockSpec((c_, c1), lambda b: (0, 0)),        # cv1 w
            pl.BlockSpec((c_, 1), lambda b: (0, 0)),         # cv1 b
            pl.BlockSpec((c_, c_), lambda b: (0, 0)),        # q/k (scaled startconv)
            pl.BlockSpec((c_, 1), lambda b: (0, 0)),
            pl.BlockSpec((c_, c_), lambda b: (0, 0)),        # value (lin_w folded)
            pl.BlockSpec((c_, 1), lambda b: (0, 0)),
            pl.BlockSpec((c_, 1), lambda b: (0, 0)),         # lin bias
            pl.BlockSpec((c2, c_), lambda b: (0, 0)),        # cv3 left half
            pl.BlockSpec((c2, c1), lambda b: (0, 0)),        # cv3 right half @ cv2
            pl.BlockSpec((c2, 1), lambda b: (0, 0)),         # folded bias
        ],
        out_specs=pl.BlockSpec((1, c2, N), lambda b: (b, 0, 0)),
        scratch_shapes=[pltpu.VMEM((c_, N), jnp.float32)],
        compiler_params=pltpu.CompilerParams(
            dimension_semantics=("parallel",),
            vmem_limit_bytes=_VMEM_LIMIT),
    )(xf, params["cv1_w"], params["cv1_b"].reshape(c_, 1), wq, bq, wv, bv, bl,
      w3a, wc, bc)

    return out.reshape(B, c2, H, W)


# ------------------------- pure-JAX reference --------------------------------

def _pconv_ref(x, w, b):
    return jnp.einsum("bchw,oc->bohw", x, w) + b[None, :, None, None]


def ectb_ref(x, params, heads=4):
    c1x = _pconv_ref(x, params["cv1_w"], params["cv1_b"])
    B, C, H, W = c1x.shape
    d = C // heads
    N = H * W
    y = _pconv_ref(c1x, params["start_w"], params["start_b"]).reshape(B, heads, d, N)
    energy = jnp.einsum("bhdn,bhdm->bhnm", y, y) / jnp.sqrt(C / 4.0)
    attn = jax.nn.softmax(energy, axis=-1)
    mu = attn.mean(axis=(-2, -1), keepdims=True)
    var = ((attn - mu) ** 2).mean(axis=(-2, -1), keepdims=True)
    attn = (attn - mu) / jnp.sqrt(var + 1e-5)
    out = jnp.einsum("bhdn,bhmn->bhdm", y, attn)
    out = (jnp.einsum("ij,bhjn->bhin", params["lin_w"], out)
           + params["lin_b"][None, None, :, None])
    cm = out.reshape(B, C, H, W) + c1x
    c2x = _pconv_ref(x, params["cv2_w"], params["cv2_b"])
    cat = jnp.concatenate([cm, c2x], axis=1)
    return _pconv_ref(cat, params["cv3_w"], params["cv3_b"])


# --------------------------------- main --------------------------------------

if __name__ == "__main__":
    B, c1, c2, H, W = 2, 16, 32, 8, 8
    heads = 4
    c_ = int(c2 * 0.5)            # = 16
    d = c_ // heads               # = 4

    key = jax.random.PRNGKey(0)
    ks = jax.random.split(key, 11)

    def wgt(k, shape, s=0.1):
        return (s * jax.random.normal(k, shape)).astype(jnp.float32)

    params = {
        "cv1_w": wgt(ks[0], (c_, c1)), "cv1_b": wgt(ks[1], (c_,), 0.01),
        "cv2_w": wgt(ks[2], (c_, c1)), "cv2_b": wgt(ks[3], (c_,), 0.01),
        "cv3_w": wgt(ks[4], (c2, c2)), "cv3_b": wgt(ks[5], (c2,), 0.01),
        "start_w": wgt(ks[6], (c_, c_)), "start_b": wgt(ks[7], (c_,), 0.01),
        "lin_w": wgt(ks[8], (d, d)), "lin_b": wgt(ks[9], (d,), 0.01),
    }

    x = jax.random.normal(ks[10], (B, c1, H, W), dtype=jnp.float32)

    fwd = jax.jit(ectb_forward,
                  static_argnames=("heads", "compute_dtype", "approx_recip"))

    ref = jax.block_until_ready(ectb_ref(x, params, heads=heads))

    # Precise path: f32 MXU operands, exact reciprocal (strict check).
    out = jax.block_until_ready(fwd(x, params, heads=heads))
    assert out.shape == (B, c2, H, W), out.shape
    assert jnp.allclose(out, ref, rtol=1e-3, atol=1e-3), float(
        jnp.max(jnp.abs(out - ref)))

    # Fast path (v6e/v7x): bf16 MXU operands with f32 accumulation + approx recip.
    out_fast = jax.block_until_ready(
        fwd(x, params, heads=heads, compute_dtype=jnp.bfloat16, approx_recip=True))
    assert out_fast.shape == (B, c2, H, W), out_fast.shape
    assert jnp.allclose(out_fast, ref, rtol=2e-2, atol=2e-2), float(
        jnp.max(jnp.abs(out_fast - ref)))

    print("KERNEL_OK")
</pallas_src>

<mosaic_0001>
module attributes {stable_mosaic.version = 11 : i64} {
  func.func @_ectb_kernel(%arg0: i32, %arg1: memref<1x16x64xf32, #tpu.memory_space<vmem>>, %arg2: memref<16x16xf32, #tpu.memory_space<vmem>>, %arg3: memref<16x1xf32, #tpu.memory_space<vmem>>, %arg4: memref<16x16xf32, #tpu.memory_space<vmem>>, %arg5: memref<16x1xf32, #tpu.memory_space<vmem>>, %arg6: memref<16x16xf32, #tpu.memory_space<vmem>>, %arg7: memref<16x1xf32, #tpu.memory_space<vmem>>, %arg8: memref<16x1xf32, #tpu.memory_space<vmem>>, %arg9: memref<32x16xf32, #tpu.memory_space<vmem>>, %arg10: memref<32x16xf32, #tpu.memory_space<vmem>>, %arg11: memref<32x1xf32, #tpu.memory_space<vmem>>, %arg12: memref<1x32x64xf32, #tpu.memory_space<vmem>>, %arg13: memref<16x64xf32, #tpu.memory_space<vmem>>) attributes {dimension_semantics = [#tpu.dimension_semantics<parallel>], iteration_bounds = array<i64: 2>, scalar_prefetch = 0 : i64, scratch_operands = 1 : i64, tpu.core_type = #tpu.core_type<tc>, window_params = [{transform_indices = @transform_0, window_bounds = array<i64: 1, 16, 64>}, {pipeline_mode = #tpu.pipeline_mode<synchronous>, transform_indices = @transform_1, window_bounds = array<i64: 16, 16>}, {pipeline_mode = #tpu.pipeline_mode<synchronous>, transform_indices = @transform_2, window_bounds = array<i64: 16, 1>}, {pipeline_mode = #tpu.pipeline_mode<synchronous>, transform_indices = @transform_3, window_bounds = array<i64: 16, 16>}, {pipeline_mode = #tpu.pipeline_mode<synchronous>, transform_indices = @transform_4, window_bounds = array<i64: 16, 1>}, {pipeline_mode = #tpu.pipeline_mode<synchronous>, transform_indices = @transform_5, window_bounds = array<i64: 16, 16>}, {pipeline_mode = #tpu.pipeline_mode<synchronous>, transform_indices = @transform_6, window_bounds = array<i64: 16, 1>}, {pipeline_mode = #tpu.pipeline_mode<synchronous>, transform_indices = @transform_7, window_bounds = array<i64: 16, 1>}, {pipeline_mode = #tpu.pipeline_mode<synchronous>, transform_indices = @transform_8, window_bounds = array<i64: 32, 16>}, {pipeline_mode = #tpu.pipeline_mode<synchronous>, transform_indices = @transform_9, window_bounds = array<i64: 32, 16>}, {pipeline_mode = #tpu.pipeline_mode<synchronous>, transform_indices = @transform_10, window_bounds = array<i64: 32, 1>}, {transform_indices = @transform_11, window_bounds = array<i64: 1, 32, 64>}]} {
    %c0 = arith.constant 0 : index
    %c0_0 = arith.constant 0 : index
    %c0_1 = arith.constant 0 : index
    %0 = vector.load %arg1[%c0, %c0_0, %c0_1] : memref<1x16x64xf32, #tpu.memory_space<vmem>>, vector<1x16x64xf32>
    %1 = vector.shape_cast %0 : vector<1x16x64xf32> to vector<16x64xf32>
    %c0_2 = arith.constant 0 : index
    %c0_3 = arith.constant 0 : index
    %2 = vector.load %arg2[%c0_2, %c0_3] : memref<16x16xf32, #tpu.memory_space<vmem>>, vector<16x16xf32>
    %cst = arith.constant dense<0.000000e+00> : vector<16x64xf32>
    %3 = tpu.matmul %2, %1, %cst {dimension_numbers = #tpu.dot_dimension_numbers<[1], [0], [0], [1], [0, 0, 1, 1], [], []>} : vector<16x16xf32>, vector<16x64xf32>, vector<16x64xf32> -> vector<16x64xf32>
    %c0_4 = arith.constant 0 : index
    %c0_5 = arith.constant 0 : index
    %4 = vector.load %arg3[%c0_4, %c0_5] : memref<16x1xf32, #tpu.memory_space<vmem>>, vector<16x1xf32>
    %5 = vector.broadcast %4 : vector<16x1xf32> to vector<16x64xf32>
    %6 = arith.addf %3, %5 : vector<16x64xf32>
    %c0_6 = arith.constant 0 : index
    %c0_7 = arith.constant 0 : index
    %7 = vector.load %arg4[%c0_6, %c0_7] : memref<16x16xf32, #tpu.memory_space<vmem>>, vector<16x16xf32>
    %cst_8 = arith.constant dense<0.000000e+00> : vector<16x64xf32>
    %8 = tpu.matmul %7, %6, %cst_8 {dimension_numbers = #tpu.dot_dimension_numbers<[1], [0], [0], [1], [0, 0, 1, 1], [], []>} : vector<16x16xf32>, vector<16x64xf32>, vector<16x64xf32> -> vector<16x64xf32>
    %c0_9 = arith.constant 0 : index
    %c0_10 = arith.constant 0 : index
    %9 = vector.load %arg5[%c0_9, %c0_10] : memref<16x1xf32, #tpu.memory_space<vmem>>, vector<16x1xf32>
    %10 = vector.broadcast %9 : vector<16x1xf32> to vector<16x64xf32>
    %11 = arith.addf %8, %10 : vector<16x64xf32>
    %c0_11 = arith.constant 0 : index
    %c0_12 = arith.constant 0 : index
    %12 = vector.load %arg6[%c0_11, %c0_12] : memref<16x16xf32, #tpu.memory_space<vmem>>, vector<16x16xf32>
    %cst_13 = arith.constant dense<0.000000e+00> : vector<16x64xf32>
    %13 = tpu.matmul %12, %6, %cst_13 {dimension_numbers = #tpu.dot_dimension_numbers<[1], [0], [0], [1], [0, 0, 1, 1], [], []>} : vector<16x16xf32>, vector<16x64xf32>, vector<16x64xf32> -> vector<16x64xf32>
    %c0_14 = arith.constant 0 : index
    %c0_15 = arith.constant 0 : index
    %14 = vector.load %arg7[%c0_14, %c0_15] : memref<16x1xf32, #tpu.memory_space<vmem>>, vector<16x1xf32>
    %15 = vector.broadcast %14 : vector<16x1xf32> to vector<16x64xf32>
    %16 = arith.addf %13, %15 : vector<16x64xf32>
    %c0_16 = arith.constant 0 : index
    %c0_17 = arith.constant 0 : index
    %17 = vector.load %arg8[%c0_16, %c0_17] : memref<16x1xf32, #tpu.memory_space<vmem>>, vector<16x1xf32>
    %18 = vector.extract_strided_slice %11 {offsets = [0, 0], sizes = [4, 64], strides = [1, 1]} : vector<16x64xf32> to vector<4x64xf32>
    %cst_18 = arith.constant dense<0.000000e+00> : vector<64x64xf32>
    %19 = tpu.matmul %18, %18, %cst_18 {dimension_numbers = #tpu.dot_dimension_numbers<[0], [0], [1], [1], [0, 1, 1, 1], [], []>} : vector<4x64xf32>, vector<4x64xf32>, vector<64x64xf32> -> vector<64x64xf32>
    %cst_19 = arith.constant dense<0xFF800000> : vector<64xf32>
    %20 = vector.multi_reduction <maximumf>, %19, %cst_19 [1] : vector<64x64xf32> to vector<64xf32>
    %21 = vector.shape_cast %20 : vector<64xf32> to vector<64x1xf32>
    %22 = vector.broadcast %21 : vector<64x1xf32> to vector<64x64xf32>
    %23 = arith.subf %19, %22 : vector<64x64xf32>
    %24 = math.exp %23 : vector<64x64xf32>
    %cst_20 = arith.constant dense<0.000000e+00> : vector<64xf32>
    %25 = vector.multi_reduction <add>, %24, %cst_20 [1] : vector<64x64xf32> to vector<64xf32>
    %26 = vector.shape_cast %25 : vector<64xf32> to vector<64x1xf32>
    %27 = tpu.reciprocal %26 : vector<64x1xf32> -> vector<64x1xf32>
    %28 = vector.broadcast %27 : vector<64x1xf32> to vector<64x64xf32>
    %29 = arith.mulf %24, %28 : vector<64x64xf32>
    %30 = vector.shape_cast %29 : vector<64x64xf32> to vector<1x64x64xf32>
    %cst_21 = arith.constant dense<0.000000e+00> : vector<1xf32>
    %31 = vector.multi_reduction <add>, %30, %cst_21 [1, 2] : vector<1x64x64xf32> to vector<1xf32>
    %32 = vector.shape_cast %31 : vector<1xf32> to vector<1x1x1xf32>
    %33 = vector.extract %32[0, 0, 0] : f32 from vector<1x1x1xf32>
    %cst_22 = arith.constant 4.096000e+03 : f32
    %34 = arith.divf %33, %cst_22 : f32
    %35 = vector.broadcast %34 : f32 to vector<64x64xf32>
    %36 = arith.subf %29, %35 : vector<64x64xf32>
    %37 = arith.mulf %36, %36 : vector<64x64xf32>
    %38 = vector.shape_cast %37 : vector<64x64xf32> to vector<1x64x64xf32>
    %cst_23 = arith.constant dense<0.000000e+00> : vector<1xf32>
    %39 = vector.multi_reduction <add>, %38, %cst_23 [1, 2] : vector<1x64x64xf32> to vector<1xf32>
    %40 = vector.shape_cast %39 : vector<1xf32> to vector<1x1x1xf32>
    %41 = vector.extract %40[0, 0, 0] : f32 from vector<1x1x1xf32>
    %cst_24 = arith.constant 4.096000e+03 : f32
    %42 = arith.divf %41, %cst_24 : f32
    %43 = vector.broadcast %34 : f32 to vector<64x64xf32>
    %44 = arith.subf %29, %43 : vector<64x64xf32>
    %cst_25 = arith.constant 9.99999974E-6 : f32
    %45 = arith.addf %42, %cst_25 : f32
    %46 = math.rsqrt %45 : f32
    %47 = vector.broadcast %46 : f32 to vector<64x64xf32>
    %48 = arith.mulf %44, %47 : vector<64x64xf32>
    %49 = vector.extract_strided_slice %16 {offsets = [0, 0], sizes = [4, 64], strides = [1, 1]} : vector<16x64xf32> to vector<4x64xf32>
    %cst_26 = arith.constant dense<0.000000e+00> : vector<4x64xf32>
    %50 = tpu.matmul %49, %48, %cst_26 {dimension_numbers = #tpu.dot_dimension_numbers<[1], [1], [0], [0], [0, 0, 1, 0], [], []>} : vector<4x64xf32>, vector<64x64xf32>, vector<4x64xf32> -> vector<4x64xf32>
    %51 = vector.extract_strided_slice %17 {offsets = [0, 0], sizes = [4, 1], strides = [1, 1]} : vector<16x1xf32> to vector<4x1xf32>
    %52 = vector.broadcast %51 : vector<4x1xf32> to vector<4x64xf32>
    %53 = arith.addf %50, %52 : vector<4x64xf32>
    %54 = vector.extract_strided_slice %6 {offsets = [0, 0], sizes = [4, 64], strides = [1, 1]} : vector<16x64xf32> to vector<4x64xf32>
    %55 = arith.addf %53, %54 : vector<4x64xf32>
    %c0_27 = arith.constant 0 : index
    %c0_28 = arith.constant 0 : index
    %56 = vector.load %arg13[%c0_27, %c0_28] : memref<16x64xf32, #tpu.memory_space<vmem>>, vector<4x64xf32>
    tpu.vector_store %arg13[%c0_27, %c0_28], %55 {strides = array<i32>} : memref<16x64xf32, #tpu.memory_space<vmem>>, vector<4x64xf32>,
    %57 = vector.extract_strided_slice %11 {offsets = [4, 0], sizes = [4, 64], strides = [1, 1]} : vector<16x64xf32> to vector<4x64xf32>
    %cst_29 = arith.constant dense<0.000000e+00> : vector<64x64xf32>
    %58 = tpu.matmul %57, %57, %cst_29 {dimension_numbers = #tpu.dot_dimension_numbers<[0], [0], [1], [1], [0, 1, 1, 1], [], []>} : vector<4x64xf32>, vector<4x64xf32>, vector<64x64xf32> -> vector<64x64xf32>
    %cst_30 = arith.constant dense<0xFF800000> : vector<64xf32>
    %59 = vector.multi_reduction <maximumf>, %58, %cst_30 [1] : vector<64x64xf32> to vector<64xf32>
    %60 = vector.shape_cast %59 : vector<64xf32> to vector<64x1xf32>
    %61 = vector.broadcast %60 : vector<64x1xf32> to vector<64x64xf32>
    %62 = arith.subf %58, %61 : vector<64x64xf32>
    %63 = math.exp %62 : vector<64x64xf32>
    %cst_31 = arith.constant dense<0.000000e+00> : vector<64xf32>
    %64 = vector.multi_reduction <add>, %63, %cst_31 [1] : vector<64x64xf32> to vector<64xf32>
    %65 = vector.shape_cast %64 : vector<64xf32> to vector<64x1xf32>
    %66 = tpu.reciprocal %65 : vector<64x1xf32> -> vector<64x1xf32>
    %67 = vector.broadcast %66 : vector<64x1xf32> to vector<64x64xf32>
    %68 = arith.mulf %63, %67 : vector<64x64xf32>
    %69 = vector.shape_cast %68 : vector<64x64xf32> to vector<1x64x64xf32>
    %cst_32 = arith.constant dense<0.000000e+00> : vector<1xf32>
    %70 = vector.multi_reduction <add>, %69, %cst_32 [1, 2] : vector<1x64x64xf32> to vector<1xf32>
    %71 = vector.shape_cast %70 : vector<1xf32> to vector<1x1x1xf32>
    %72 = vector.extract %71[0, 0, 0] : f32 from vector<1x1x1xf32>
    %cst_33 = arith.constant 4.096000e+03 : f32
    %73 = arith.divf %72, %cst_33 : f32
    %74 = vector.broadcast %73 : f32 to vector<64x64xf32>
    %75 = arith.subf %68, %74 : vector<64x64xf32>
    %76 = arith.mulf %75, %75 : vector<64x64xf32>
    %77 = vector.shape_cast %76 : vector<64x64xf32> to vector<1x64x64xf32>
    %cst_34 = arith.constant dense<0.000000e+00> : vector<1xf32>
    %78 = vector.multi_reduction <add>, %77, %cst_34 [1, 2] : vector<1x64x64xf32> to vector<1xf32>
    %79 = vector.shape_cast %78 : vector<1xf32> to vector<1x1x1xf32>
    %80 = vector.extract %79[0, 0, 0] : f32 from vector<1x1x1xf32>
    %cst_35 = arith.constant 4.096000e+03 : f32
    %81 = arith.divf %80, %cst_35 : f32
    %82 = vector.broadcast %73 : f32 to vector<64x64xf32>
    %83 = arith.subf %68, %82 : vector<64x64xf32>
    %cst_36 = arith.constant 9.99999974E-6 : f32
    %84 = arith.addf %81, %cst_36 : f32
    %85 = math.rsqrt %84 : f32
    %86 = vector.broadcast %85 : f32 to vector<64x64xf32>
    %87 = arith.mulf %83, %86 : vector<64x64xf32>
    %88 = vector.extract_strided_slice %16 {offsets = [4, 0], sizes = [4, 64], strides = [1, 1]} : vector<16x64xf32> to vector<4x64xf32>
    %cst_37 = arith.constant dense<0.000000e+00> : vector<4x64xf32>
    %89 = tpu.matmul %88, %87, %cst_37 {dimension_numbers = #tpu.dot_dimension_numbers<[1], [1], [0], [0], [0, 0, 1, 0], [], []>} : vector<4x64xf32>, vector<64x64xf32>, vector<4x64xf32> -> vector<4x64xf32>
    %90 = vector.extract_strided_slice %17 {offsets = [4, 0], sizes = [4, 1], strides = [1, 1]} : vector<16x1xf32> to vector<4x1xf32>
    %91 = vector.broadcast %90 : vector<4x1xf32> to vector<4x64xf32>
    %92 = arith.addf %89, %91 : vector<4x64xf32>
    %93 = vector.extract_strided_slice %6 {offsets = [4, 0], sizes = [4, 64], strides = [1, 1]} : vector<16x64xf32> to vector<4x64xf32>
    %94 = arith.addf %92, %93 : vector<4x64xf32>
    %c4 = arith.constant 4 : index
    %c0_38 = arith.constant 0 : index
    %95 = vector.load %arg13[%c4, %c0_38] : memref<16x64xf32, #tpu.memory_space<vmem>>, vector<4x64xf32>
    tpu.vector_store %arg13[%c4, %c0_38], %94 {strides = array<i32>} : memref<16x64xf32, #tpu.memory_space<vmem>>, vector<4x64xf32>,
    %96 = vector.extract_strided_slice %11 {offsets = [8, 0], sizes = [4, 64], strides = [1, 1]} : vector<16x64xf32> to vector<4x64xf32>
    %cst_39 = arith.constant dense<0.000000e+00> : vector<64x64xf32>
    %97 = tpu.matmul %96, %96, %cst_39 {dimension_numbers = #tpu.dot_dimension_numbers<[0], [0], [1], [1], [0, 1, 1, 1], [], []>} : vector<4x64xf32>, vector<4x64xf32>, vector<64x64xf32> -> vector<64x64xf32>
    %cst_40 = arith.constant dense<0xFF800000> : vector<64xf32>
    %98 = vector.multi_reduction <maximumf>, %97, %cst_40 [1] : vector<64x64xf32> to vector<64xf32>
    %99 = vector.shape_cast %98 : vector<64xf32> to vector<64x1xf32>
    %100 = vector.broadcast %99 : vector<64x1xf32> to vector<64x64xf32>
    %101 = arith.subf %97, %100 : vector<64x64xf32>
    %102 = math.exp %101 : vector<64x64xf32>
    %cst_41 = arith.constant dense<0.000000e+00> : vector<64xf32>
    %103 = vector.multi_reduction <add>, %102, %cst_41 [1] : vector<64x64xf32> to vector<64xf32>
    %104 = vector.shape_cast %103 : vector<64xf32> to vector<64x1xf32>
    %105 = tpu.reciprocal %104 : vector<64x1xf32> -> vector<64x1xf32>
    %106 = vector.broadcast %105 : vector<64x1xf32> to vector<64x64xf32>
    %107 = arith.mulf %102, %106 : vector<64x64xf32>
    %108 = vector.shape_cast %107 : vector<64x64xf32> to vector<1x64x64xf32>
    %cst_42 = arith.constant dense<0.000000e+00> : vector<1xf32>
    %109 = vector.multi_reduction <add>, %108, %cst_42 [1, 2] : vector<1x64x64xf32> to vector<1xf32>
    %110 = vector.shape_cast %109 : vector<1xf32> to vector<1x1x1xf32>
    %111 = vector.extract %110[0, 0, 0] : f32 from vector<1x1x1xf32>
    %cst_43 = arith.constant 4.096000e+03 : f32
    %112 = arith.divf %111, %cst_43 : f32
    %113 = vector.broadcast %112 : f32 to vector<64x64xf32>
    %114 = arith.subf %107, %113 : vector<64x64xf32>
    %115 = arith.mulf %114, %114 : vector<64x64xf32>
    %116 = vector.shape_cast %115 : vector<64x64xf32> to vector<1x64x64xf32>
    %cst_44 = arith.constant dense<0.000000e+00> : vector<1xf32>
    %117 = vector.multi_reduction <add>, %116, %cst_44 [1, 2] : vector<1x64x64xf32> to vector<1xf32>
    %118 = vector.shape_cast %117 : vector<1xf32> to vector<1x1x1xf32>
    %119 = vector.extract %118[0, 0, 0] : f32 from vector<1x1x1xf32>
    %cst_45 = arith.constant 4.096000e+03 : f32
    %120 = arith.divf %119, %cst_45 : f32
    %121 = vector.broadcast %112 : f32 to vector<64x64xf32>
    %122 = arith.subf %107, %121 : vector<64x64xf32>
    %cst_46 = arith.constant 9.99999974E-6 : f32
    %123 = arith.addf %120, %cst_46 : f32
    %124 = math.rsqrt %123 : f32
    %125 = vector.broadcast %124 : f32 to vector<64x64xf32>
    %126 = arith.mulf %122, %125 : vector<64x64xf32>
    %127 = vector.extract_strided_slice %16 {offsets = [8, 0], sizes = [4, 64], strides = [1, 1]} : vector<16x64xf32> to vector<4x64xf32>
    %cst_47 = arith.constant dense<0.000000e+00> : vector<4x64xf32>
    %128 = tpu.matmul %127, %126, %cst_47 {dimension_numbers = #tpu.dot_dimension_numbers<[1], [1], [0], [0], [0, 0, 1, 0], [], []>} : vector<4x64xf32>, vector<64x64xf32>, vector<4x64xf32> -> vector<4x64xf32>
    %129 = vector.extract_strided_slice %17 {offsets = [8, 0], sizes = [4, 1], strides = [1, 1]} : vector<16x1xf32> to vector<4x1xf32>
    %130 = vector.broadcast %129 : vector<4x1xf32> to vector<4x64xf32>
    %131 = arith.addf %128, %130 : vector<4x64xf32>
    %132 = vector.extract_strided_slice %6 {offsets = [8, 0], sizes = [4, 64], strides = [1, 1]} : vector<16x64xf32> to vector<4x64xf32>
    %133 = arith.addf %131, %132 : vector<4x64xf32>
    %c8 = arith.constant 8 : index
    %c0_48 = arith.constant 0 : index
    %134 = vector.load %arg13[%c8, %c0_48] : memref<16x64xf32, #tpu.memory_space<vmem>>, vector<4x64xf32>
    tpu.vector_store %arg13[%c8, %c0_48], %133 {strides = array<i32>} : memref<16x64xf32, #tpu.memory_space<vmem>>, vector<4x64xf32>,
    %135 = vector.extract_strided_slice %11 {offsets = [12, 0], sizes = [4, 64], strides = [1, 1]} : vector<16x64xf32> to vector<4x64xf32>
    %cst_49 = arith.constant dense<0.000000e+00> : vector<64x64xf32>
    %136 = tpu.matmul %135, %135, %cst_49 {dimension_numbers = #tpu.dot_dimension_numbers<[0], [0], [1], [1], [0, 1, 1, 1], [], []>} : vector<4x64xf32>, vector<4x64xf32>, vector<64x64xf32> -> vector<64x64xf32>
    %cst_50 = arith.constant dense<0xFF800000> : vector<64xf32>
    %137 = vector.multi_reduction <maximumf>, %136, %cst_50 [1] : vector<64x64xf32> to vector<64xf32>
    %138 = vector.shape_cast %137 : vector<64xf32> to vector<64x1xf32>
    %139 = vector.broadcast %138 : vector<64x1xf32> to vector<64x64xf32>
    %140 = arith.subf %136, %139 : vector<64x64xf32>
    %141 = math.exp %140 : vector<64x64xf32>
    %cst_51 = arith.constant dense<0.000000e+00> : vector<64xf32>
    %142 = vector.multi_reduction <add>, %141, %cst_51 [1] : vector<64x64xf32> to vector<64xf32>
    %143 = vector.shape_cast %142 : vector<64xf32> to vector<64x1xf32>
    %144 = tpu.reciprocal %143 : vector<64x1xf32> -> vector<64x1xf32>
    %145 = vector.broadcast %144 : vector<64x1xf32> to vector<64x64xf32>
    %146 = arith.mulf %141, %145 : vector<64x64xf32>
    %147 = vector.shape_cast %146 : vector<64x64xf32> to vector<1x64x64xf32>
    %cst_52 = arith.constant dense<0.000000e+00> : vector<1xf32>
    %148 = vector.multi_reduction <add>, %147, %cst_52 [1, 2] : vector<1x64x64xf32> to vector<1xf32>
    %149 = vector.shape_cast %148 : vector<1xf32> to vector<1x1x1xf32>
    %150 = vector.extract %149[0, 0, 0] : f32 from vector<1x1x1xf32>
    %cst_53 = arith.constant 4.096000e+03 : f32
    %151 = arith.divf %150, %cst_53 : f32
    %152 = vector.broadcast %151 : f32 to vector<64x64xf32>
    %153 = arith.subf %146, %152 : vector<64x64xf32>
    %154 = arith.mulf %153, %153 : vector<64x64xf32>
    %155 = vector.shape_cast %154 : vector<64x64xf32> to vector<1x64x64xf32>
    %cst_54 = arith.constant dense<0.000000e+00> : vector<1xf32>
    %156 = vector.multi_reduction <add>, %155, %cst_54 [1, 2] : vector<1x64x64xf32> to vector<1xf32>
    %157 = vector.shape_cast %156 : vector<1xf32> to vector<1x1x1xf32>
    %158 = vector.extract %157[0, 0, 0] : f32 from vector<1x1x1xf32>
    %cst_55 = arith.constant 4.096000e+03 : f32
    %159 = arith.divf %158, %cst_55 : f32
    %160 = vector.broadcast %151 : f32 to vector<64x64xf32>
    %161 = arith.subf %146, %160 : vector<64x64xf32>
    %cst_56 = arith.constant 9.99999974E-6 : f32
    %162 = arith.addf %159, %cst_56 : f32
    %163 = math.rsqrt %162 : f32
    %164 = vector.broadcast %163 : f32 to vector<64x64xf32>
    %165 = arith.mulf %161, %164 : vector<64x64xf32>
    %166 = vector.extract_strided_slice %16 {offsets = [12, 0], sizes = [4, 64], strides = [1, 1]} : vector<16x64xf32> to vector<4x64xf32>
    %cst_57 = arith.constant dense<0.000000e+00> : vector<4x64xf32>
    %167 = tpu.matmul %166, %165, %cst_57 {dimension_numbers = #tpu.dot_dimension_numbers<[1], [1], [0], [0], [0, 0, 1, 0], [], []>} : vector<4x64xf32>, vector<64x64xf32>, vector<4x64xf32> -> vector<4x64xf32>
    %168 = vector.extract_strided_slice %17 {offsets = [12, 0], sizes = [4, 1], strides = [1, 1]} : vector<16x1xf32> to vector<4x1xf32>
    %169 = vector.broadcast %168 : vector<4x1xf32> to vector<4x64xf32>
    %170 = arith.addf %167, %169 : vector<4x64xf32>
    %171 = vector.extract_strided_slice %6 {offsets = [12, 0], sizes = [4, 64], strides = [1, 1]} : vector<16x64xf32> to vector<4x64xf32>
    %172 = arith.addf %170, %171 : vector<4x64xf32>
    %c12 = arith.constant 12 : index
    %c0_58 = arith.constant 0 : index
    %173 = vector.load %arg13[%c12, %c0_58] : memref<16x64xf32, #tpu.memory_space<vmem>>, vector<4x64xf32>
    tpu.vector_store %arg13[%c12, %c0_58], %172 {strides = array<i32>} : memref<16x64xf32, #tpu.memory_space<vmem>>, vector<4x64xf32>,
    %c0_59 = arith.constant 0 : index
    %c0_60 = arith.constant 0 : index
    %174 = vector.load %arg9[%c0_59, %c0_60] : memref<32x16xf32, #tpu.memory_space<vmem>>, vector<32x16xf32>
    %c0_61 = arith.constant 0 : index
    %c0_62 = arith.constant 0 : index
    %175 = vector.load %arg13[%c0_61, %c0_62] : memref<16x64xf32, #tpu.memory_space<vmem>>, vector<16x64xf32>
    %cst_63 = arith.constant dense<0.000000e+00> : vector<32x64xf32>
    %176 = tpu.matmul %174, %175, %cst_63 {dimension_numbers = #tpu.dot_dimension_numbers<[1], [0], [0], [1], [0, 0, 1, 1], [], []>} : vector<32x16xf32>, vector<16x64xf32>, vector<32x64xf32> -> vector<32x64xf32>
    %c0_64 = arith.constant 0 : index
    %c0_65 = arith.constant 0 : index
    %177 = vector.load %arg10[%c0_64, %c0_65] : memref<32x16xf32, #tpu.memory_space<vmem>>, vector<32x16xf32>
    %cst_66 = arith.constant dense<0.000000e+00> : vector<32x64xf32>
    %178 = tpu.matmul %177, %1, %cst_66 {dimension_numbers = #tpu.dot_dimension_numbers<[1], [0], [0], [1], [0, 0, 1, 1], [], []>} : vector<32x16xf32>, vector<16x64xf32>, vector<32x64xf32> -> vector<32x64xf32>
    %179 = arith.addf %176, %178 : vector<32x64xf32>
    %c0_67 = arith.constant 0 : index
    %c0_68 = arith.constant 0 : index
    %180 = vector.load %arg11[%c0_67, %c0_68] : memref<32x1xf32, #tpu.memory_space<vmem>>, vector<32x1xf32>
    %181 = vector.broadcast %180 : vector<32x1xf32> to vector<32x64xf32>
    %182 = arith.addf %179, %181 : vector<32x64xf32>
    %c0_69 = arith.constant 0 : index
    %c0_70 = arith.constant 0 : index
    %c0_71 = arith.constant 0 : index
    %183 = vector.load %arg12[%c0_69, %c0_70, %c0_71] : memref<1x32x64xf32, #tpu.memory_space<vmem>>, vector<1x32x64xf32>
    %184 = vector.shape_cast %183 : vector<1x32x64xf32> to vector<32x64xf32>
    %185 = vector.shape_cast %182 : vector<32x64xf32> to vector<1x32x64xf32>
    tpu.vector_store %arg12[%c0_69, %c0_70, %c0_71], %185 {strides = array<i32>} : memref<1x32x64xf32, #tpu.memory_space<vmem>>, vector<1x32x64xf32>,
    return
  }
  func.func @transform_0(%arg0: i32) -> (i32, i32, i32) {
    %c0_i32 = arith.constant 0 : i32
    %c0_i32_0 = arith.constant 0 : i32
    %c0_i32_1 = arith.constant 0 : i32
    return %arg0, %c0_i32, %c0_i32_0 : i32, i32, i32
  }
  func.func @transform_1(%arg0: i32) -> (i32, i32) {
    %c0_i32 = arith.constant 0 : i32
    %c0_i32_0 = arith.constant 0 : i32
    %c0_i32_1 = arith.constant 0 : i32
    return %c0_i32, %c0_i32_0 : i32, i32
  }
  func.func @transform_2(%arg0: i32) -> (i32, i32) {
    %c0_i32 = arith.constant 0 : i32
    %c0_i32_0 = arith.constant 0 : i32
    %c0_i32_1 = arith.constant 0 : i32
    return %c0_i32, %c0_i32_0 : i32, i32
  }
  func.func @transform_3(%arg0: i32) -> (i32, i32) {
    %c0_i32 = arith.constant 0 : i32
    %c0_i32_0 = arith.constant 0 : i32
    %c0_i32_1 = arith.constant 0 : i32
    return %c0_i32, %c0_i32_0 : i32, i32
  }
  func.func @transform_4(%arg0: i32) -> (i32, i32) {
    %c0_i32 = arith.constant 0 : i32
    %c0_i32_0 = arith.constant 0 : i32
    %c0_i32_1 = arith.constant 0 : i32
    return %c0_i32, %c0_i32_0 : i32, i32
  }
  func.func @transform_5(%arg0: i32) -> (i32, i32) {
    %c0_i32 = arith.constant 0 : i32
    %c0_i32_0 = arith.constant 0 : i32
    %c0_i32_1 = arith.constant 0 : i32
    return %c0_i32, %c0_i32_0 : i32, i32
  }
  func.func @transform_6(%arg0: i32) -> (i32, i32) {
    %c0_i32 = arith.constant 0 : i32
    %c0_i32_0 = arith.constant 0 : i32
    %c0_i32_1 = arith.constant 0 : i32
    return %c0_i32, %c0_i32_0 : i32, i32
  }
  func.func @transform_7(%arg0: i32) -> (i32, i32) {
    %c0_i32 = arith.constant 0 : i32
    %c0_i32_0 = arith.constant 0 : i32
    %c0_i32_1 = arith.constant 0 : i32
    return %c0_i32, %c0_i32_0 : i32, i32
  }
  func.func @transform_8(%arg0: i32) -> (i32, i32) {
    %c0_i32 = arith.constant 0 : i32
    %c0_i32_0 = arith.constant 0 : i32
    %c0_i32_1 = arith.constant 0 : i32
    return %c0_i32, %c0_i32_0 : i32, i32
  }
  func.func @transform_9(%arg0: i32) -> (i32, i32) {
    %c0_i32 = arith.constant 0 : i32
    %c0_i32_0 = arith.constant 0 : i32
    %c0_i32_1 = arith.constant 0 : i32
    return %c0_i32, %c0_i32_0 : i32, i32
  }
  func.func @transform_10(%arg0: i32) -> (i32, i32) {
    %c0_i32 = arith.constant 0 : i32
    %c0_i32_0 = arith.constant 0 : i32
    %c0_i32_1 = arith.constant 0 : i32
    return %c0_i32, %c0_i32_0 : i32, i32
  }
  func.func @transform_11(%arg0: i32) -> (i32, i32, i32) {
    %c0_i32 = arith.constant 0 : i32
    %c0_i32_0 = arith.constant 0 : i32
    %c0_i32_1 = arith.constant 0 : i32
    return %arg0, %c0_i32, %c0_i32_0 : i32, i32, i32
  }
}

</mosaic_0001>

<llo_original>
// kernel: tile.8
$region0: #{tile.8}
  #allocation0 [shape = 's32[1]{0}', space=sflag, size = 0x4, scoped, tag = 'scoped memory for tile.8']
  %s0 = inlined_call_operand.vmem [shape: f32[4], index: 0, kind: input, shape index: {}]
  %s1 = inlined_call_operand.vmem [shape: f32[4,4], index: 1, kind: output, shape index: {}]
  // Predicated region
  $region2: #{tile.8} parent=0 // pred_check
    _
  $region3: #{tile.8} parent=0 // pred_check_branch
    %3 = sbr.rel (0) target = $region5
  $region4: #{tile.8} parent=0 // pred_region
    _
  $region5: #{tile.8} parent=0 // pred_fallthru
    _
  %v4 = vld [vmem:[%s0] ss:$0 sm:$0xff]
  %5 = vst [vmem:[%s1] sm:$0xf] %v4

// kernel: ectb_forward.1
$region0: #{ectb_forward.1}
  #allocation0 [shape = 'u32[]', space=smem, size = 0x4, offset = 0x4, fixed_abs, tag = 'smem constant byte address 0x4 - core index']
  #allocation1 [shape = 'u32[144,128]{1,0:T(1,128)}', space=vmem, size = 0x12000, scoped, tag = 'internal scratch']
  #allocation2 [shape = 'f32[16,64]{1,0:T(8,128)}', space=vmem, size = 0x2000, scoped, tag = 'scratch operand']
  %s0 = inlined_call_operand.vmem [shape: f32[2,16,64], index: 0, kind: input, shape index: {}]
  %s1 = inlined_call_operand.vmem [shape: f32[16,16], index: 1, kind: input, shape index: {}]
  %s2 = inlined_call_operand.vmem [shape: f32[16,1], index: 2, kind: input, shape index: {}]
  %s3 = inlined_call_operand.vmem [shape: f32[16,16], index: 3, kind: input, shape index: {}]
  %s4 = inlined_call_operand.vmem [shape: f32[16,1], index: 4, kind: input, shape index: {}]
  %s5 = inlined_call_operand.vmem [shape: f32[16,16], index: 5, kind: input, shape index: {}]
  %s6 = inlined_call_operand.vmem [shape: f32[16,1], index: 6, kind: input, shape index: {}]
  %s7 = inlined_call_operand.vmem [shape: f32[16,1], index: 7, kind: input, shape index: {}]
  %s8 = inlined_call_operand.vmem [shape: f32[32,16], index: 8, kind: input, shape index: {}]
  %s9 = inlined_call_operand.vmem [shape: f32[32,16], index: 9, kind: input, shape index: {}]
  %s10 = inlined_call_operand.vmem [shape: f32[32,1], index: 10, kind: input, shape index: {}]
  %s11 = inlined_call_operand.vmem [shape: f32[2,32,64], index: 11, kind: output, shape index: {}]
  %s12 = sld [smem:[#allocation0]]
  $region77: #{ectb_forward.1} parent=0
    _
  %s14 = ssub.s32 1, %s12
  %s15 = scalar_select 0, %s14, %s12
  loop: start=0, step=1, limit=4
  $region2: #{ectb_forward.1} parent=0 // loop_pre_header
    _
  $region3: #{ectb_forward.1} parent=0 // loop_header
    %s17 = sphi 0, %s21
    %p18 = scmp.ge.s32.totalorder %s17, 4
    %s27 = sphi 0, %s29
    %s30 = sphi 0, %s27
    %s31 = sphi 0, %s30
    %s47 = sphi 0, %s31
    %s51 = sphi 0, %s51
    %s53 = sphi 0, %s51
    %s54 = sphi 0, %s53
    %s68 = sphi 0, %s54
    %s72 = sphi 0, %s72
    %s74 = sphi 0, %s72
    %s75 = sphi 0, %s74
    %s89 = sphi 0, %s75
    %s93 = sphi 0, %s93
    %s95 = sphi 0, %s93
    %s96 = sphi 0, %s95
    %s110 = sphi 0, %s96
    %s114 = sphi 0, %s114
    %s116 = sphi 0, %s114
    %s117 = sphi 0, %s116
    %s131 = sphi 0, %s117
    %s135 = sphi 0, %s135
    %s137 = sphi 0, %s135
    %s138 = sphi 0, %s137
    %s152 = sphi 0, %s138
    %s156 = sphi 0, %s156
    %s158 = sphi 0, %s156
    %s159 = sphi 0, %s158
    %s173 = sphi 0, %s159
    %s177 = sphi 0, %s177
    %s179 = sphi 0, %s177
    %s180 = sphi 0, %s179
    %s194 = sphi 0, %s180
    %s198 = sphi 0, %s198
    %s200 = sphi 0, %s198
    %s201 = sphi 0, %s200
    %s215 = sphi 0, %s201
    %s219 = sphi 0, %s219
    %s221 = sphi 0, %s219
    %s222 = sphi 0, %s221
    %s236 = sphi 0, %s222
    %s240 = sphi 0, %s240
    %s242 = sphi 0, %s240
    %s243 = sphi 0, %s242
    %s257 = sphi 0, %s243
    %s263 = sphi 0, %s265
    %s266 = sphi 0, %s263
    %s267 = sphi 0, %s266
    %s283 = sphi 0, %s267
  $region4: #{ectb_forward.1} parent=0 // loop_header_branch
    %20 = sbr.rel (%p18) target = $region8
  $region5: #{ectb_forward.1} parent=0 // loop_body
    %s22 = ssub.s32 %s17, 1
    %s23 = ssub.s32 %s17, 2
    %s24 = sadd.s32 %s17, 1
    %s25 = ssub.s32 %s17, %s24
    %p26 = scmp.eq.s32.totalorder %s25, 0
    %s28 = sadd.s32 %s27, 1
    %s29 = scalar_select %p26, %s27, %s28
    %p32 = pneg %p26
    %p33 = scmp.eq.s32.totalorder %s17, 1
    %p34 = por %p32, %p33
    %p35 = scmp.ne.s32.totalorder %s27, %s30
    %p36 = scmp.eq.s32.totalorder %s17, 0
    %p37 = por %p35, %p36
    %p38 = scmp.ne.s32.totalorder %s27, %s30
    %p39 = scmp.eq.s32.totalorder %s22, 1
    %p40 = por %p38, %p39
    %p41 = scmp.ne.s32.totalorder %s30, %s31
    %p42 = scmp.eq.s32.totalorder %s22, 0
    %p43 = por %p41, %p42
    %p44 = scmp.ne.s32.totalorder %s30, %s31
    %p45 = scmp.eq.s32.totalorder %s23, 1
    %p46 = por %p44, %p45
    %p48 = scmp.ne.s32.totalorder %s31, %s47
    %p49 = scmp.eq.s32.totalorder %s23, 0
    %p50 = por %p48, %p49
    %s52 = sadd.s32 %s51, 1
    %p55 = scmp.eq.s32.totalorder %s17, 1
    %p56 = scmp.ne.s32.totalorder %s51, %s53
    %p57 = scmp.eq.s32.totalorder %s17, 0
    %p58 = por %p56, %p57
    %p59 = scmp.ne.s32.totalorder %s51, %s53
    %p60 = scmp.eq.s32.totalorder %s22, 1
    %p61 = por %p59, %p60
    %p62 = scmp.ne.s32.totalorder %s53, %s54
    %p63 = scmp.eq.s32.totalorder %s22, 0
    %p64 = por %p62, %p63
    %p65 = scmp.ne.s32.totalorder %s53, %s54
    %p66 = scmp.eq.s32.totalorder %s23, 1
    %p67 = por %p65, %p66
    %p69 = scmp.ne.s32.totalorder %s54, %s68
    %p70 = scmp.eq.s32.totalorder %s23, 0
    %p71 = por %p69, %p70
    %s73 = sadd.s32 %s72, 1
    %p76 = scmp.eq.s32.totalorder %s17, 1
    %p77 = scmp.ne.s32.totalorder %s72, %s74
    %p78 = scmp.eq.s32.totalorder %s17, 0
    %p79 = por %p77, %p78
    %p80 = scmp.ne.s32.totalorder %s72, %s74
    %p81 = scmp.eq.s32.totalorder %s22, 1
    %p82 = por %p80, %p81
    %p83 = scmp.ne.s32.totalorder %s74, %s75
    %p84 = scmp.eq.s32.totalorder %s22, 0
    %p85 = por %p83, %p84
    %p86 = scmp.ne.s32.totalorder %s74, %s75
    %p87 = scmp.eq.s32.totalorder %s23, 1
    %p88 = por %p86, %p87
    %p90 = scmp.ne.s32.totalorder %s75, %s89
    %p91 = scmp.eq.s32.totalorder %s23, 0
    %p92 = por %p90, %p91
    %s94 = sadd.s32 %s93, 1
    %p97 = scmp.eq.s32.totalorder %s17, 1
    %p98 = scmp.ne.s32.totalorder %s93, %s95
    %p99 = scmp.eq.s32.totalorder %s17, 0
    %p100 = por %p98, %p99
    %p101 = scmp.ne.s32.totalorder %s93, %s95
    %p102 = scmp.eq.s32.totalorder %s22, 1
    %p103 = por %p101, %p102
    %p104 = scmp.ne.s32.totalorder %s95, %s96
    %p105 = scmp.eq.s32.totalorder %s22, 0
    %p106 = por %p104, %p105
    %p107 = scmp.ne.s32.totalorder %s95, %s96
    %p108 = scmp.eq.s32.totalorder %s23, 1
    %p109 = por %p107, %p108
    %p111 = scmp.ne.s32.totalorder %s96, %s110
    %p112 = scmp.eq.s32.totalorder %s23, 0
    %p113 = por %p111, %p112
    %s115 = sadd.s32 %s114, 1
    %p118 = scmp.eq.s32.totalorder %s17, 1
    %p119 = scmp.ne.s32.totalorder %s114, %s116
    %p120 = scmp.eq.s32.totalorder %s17, 0
    %p121 = por %p119, %p120
    %p122 = scmp.ne.s32.totalorder %s114, %s116
    %p123 = scmp.eq.s32.totalorder %s22, 1
    %p124 = por %p122, %p123
    %p125 = scmp.ne.s32.totalorder %s116, %s117
    %p126 = scmp.eq.s32.totalorder %s22, 0
    %p127 = por %p125, %p126
    %p128 = scmp.ne.s32.totalorder %s116, %s117
    %p129 = scmp.eq.s32.totalorder %s23, 1
    %p130 = por %p128, %p129
    %p132 = scmp.ne.s32.totalorder %s117, %s131
    %p133 = scmp.eq.s32.totalorder %s23, 0
    %p134 = por %p132, %p133
    %s136 = sadd.s32 %s135, 1
    %p139 = scmp.eq.s32.totalorder %s17, 1
    %p140 = scmp.ne.s32.totalorder %s135, %s137
    %p141 = scmp.eq.s32.totalorder %s17, 0
    %p142 = por %p140, %p141
    %p143 = scmp.ne.s32.totalorder %s135, %s137
    %p144 = scmp.eq.s32.totalorder %s22, 1
    %p145 = por %p143, %p144
    %p146 = scmp.ne.s32.totalorder %s137, %s138
    %p147 = scmp.eq.s32.totalorder %s22, 0
    %p148 = por %p146, %p147
    %p149 = scmp.ne.s32.totalorder %s137, %s138
    %p150 = scmp.eq.s32.totalorder %s23, 1
    %p151 = por %p149, %p150
    %p153 = scmp.ne.s32.totalorder %s138, %s152
    %p154 = scmp.eq.s32.totalorder %s23, 0
    %p155 = por %p153, %p154
    %s157 = sadd.s32 %s156, 1
    %p160 = scmp.eq.s32.totalorder %s17, 1
    %p161 = scmp.ne.s32.totalorder %s156, %s158
    %p162 = scmp.eq.s32.totalorder %s17, 0
    %p163 = por %p161, %p162
    %p164 = scmp.ne.s32.totalorder %s156, %s158
    %p165 = scmp.eq.s32.totalorder %s22, 1
    %p166 = por %p164, %p165
    %p167 = scmp.ne.s32.totalorder %s158, %s159
    %p168 = scmp.eq.s32.totalorder %s22, 0
    %p169 = por %p167, %p168
    %p170 = scmp.ne.s32.totalorder %s158, %s159
    %p171 = scmp.eq.s32.totalorder %s23, 1
    %p172 = por %p170, %p171
    %p174 = scmp.ne.s32.totalorder %s159, %s173
    %p175 = scmp.eq.s32.totalorder %s23, 0
    %p176 = por %p174, %p175
    %s178 = sadd.s32 %s177, 1
    %p181 = scmp.eq.s32.totalorder %s17, 1
    %p182 = scmp.ne.s32.totalorder %s177, %s179
    %p183 = scmp.eq.s32.totalorder %s17, 0
    %p184 = por %p182, %p183
    %p185 = scmp.ne.s32.totalorder %s177, %s179
    %p186 = scmp.eq.s32.totalorder %s22, 1
    %p187 = por %p185, %p186
    %p188 = scmp.ne.s32.totalorder %s179, %s180
    %p189 = scmp.eq.s32.totalorder %s22, 0
    %p190 = por %p188, %p189
    %p191 = scmp.ne.s32.totalorder %s179, %s180
    %p192 = scmp.eq.s32.totalorder %s23, 1
    %p193 = por %p191, %p192
    %p195 = scmp.ne.s32.totalorder %s180, %s194
    %p196 = scmp.eq.s32.totalorder %s23, 0
    %p197 = por %p195, %p196
    %s199 = sadd.s32 %s198, 1
    %p202 = scmp.eq.s32.totalorder %s17, 1
    %p203 = scmp.ne.s32.totalorder %s198, %s200
    %p204 = scmp.eq.s32.totalorder %s17, 0
    %p205 = por %p203, %p204
    %p206 = scmp.ne.s32.totalorder %s198, %s200
    %p207 = scmp.eq.s32.totalorder %s22, 1
    %p208 = por %p206, %p207
    %p209 = scmp.ne.s32.totalorder %s200, %s201
    %p210 = scmp.eq.s32.totalorder %s22, 0
    %p211 = por %p209, %p210
    %p212 = scmp.ne.s32.totalorder %s200, %s201
    %p213 = scmp.eq.s32.totalorder %s23, 1
    %p214 = por %p212, %p213
    %p216 = scmp.ne.s32.totalorder %s201, %s215
    %p217 = scmp.eq.s32.totalorder %s23, 0
    %p218 = por %p216, %p217
    %s220 = sadd.s32 %s219, 1
    %p223 = scmp.eq.s32.totalorder %s17, 1
    %p224 = scmp.ne.s32.totalorder %s219, %s221
    %p225 = scmp.eq.s32.totalorder %s17, 0
    %p226 = por %p224, %p225
    %p227 = scmp.ne.s32.totalorder %s219, %s221
    %p228 = scmp.eq.s32.totalorder %s22, 1
    %p229 = por %p227, %p228
    %p230 = scmp.ne.s32.totalorder %s221, %s222
    %p231 = scmp.eq.s32.totalorder %s22, 0
    %p232 = por %p230, %p231
    %p233 = scmp.ne.s32.totalorder %s221, %s222
    %p234 = scmp.eq.s32.totalorder %s23, 1
    %p235 = por %p233, %p234
    %p237 = scmp.ne.s32.totalorder %s222, %s236
    %p238 = scmp.eq.s32.totalorder %s23, 0
    %p239 = por %p237, %p238
    %s241 = sadd.s32 %s240, 1
    %p244 = scmp.eq.s32.totalorder %s17, 1
    %p245 = scmp.ne.s32.totalorder %s240, %s242
    %p246 = scmp.eq.s32.totalorder %s17, 0
    %p247 = por %p245, %p246
    %p248 = scmp.ne.s32.totalorder %s240, %s242
    %p249 = scmp.eq.s32.totalorder %s22, 1
    %p250 = por %p248, %p249
    %p251 = scmp.ne.s32.totalorder %s242, %s243
    %p252 = scmp.eq.s32.totalorder %s22, 0
    %p253 = por %p251, %p252
    %p254 = scmp.ne.s32.totalorder %s242, %s243
    %p255 = scmp.eq.s32.totalorder %s23, 1
    %p256 = por %p254, %p255
    %p258 = scmp.ne.s32.totalorder %s243, %s257
    %p259 = scmp.eq.s32.totalorder %s23, 0
    %p260 = por %p258, %p259
    %s261 = ssub.s32 %s17, %s24
    %p262 = scmp.eq.s32.totalorder %s261, 0
    %s264 = sadd.s32 %s263, 1
    %s265 = scalar_select %p262, %s263, %s264
    %p268 = pneg %p262
    %p269 = scmp.eq.s32.totalorder %s17, 1
    %p270 = por %p268, %p269
    %p271 = scmp.ne.s32.totalorder %s263, %s266
    %p272 = scmp.eq.s32.totalorder %s17, 0
    %p273 = por %p271, %p272
    %p274 = scmp.ne.s32.totalorder %s263, %s266
    %p275 = scmp.eq.s32.totalorder %s22, 1
    %p276 = por %p274, %p275
    %p277 = scmp.ne.s32.totalorder %s266, %s267
    %p278 = scmp.eq.s32.totalorder %s22, 0
    %p279 = por %p277, %p278
    %p280 = scmp.ne.s32.totalorder %s266, %s267
    %p281 = scmp.eq.s32.totalorder %s23, 1
    %p282 = por %p280, %p281
    %p284 = scmp.ne.s32.totalorder %s267, %s283
    %p285 = scmp.eq.s32.totalorder %s23, 0
    %p286 = por %p284, %p285
    %p287 = scmp.le.s32.totalorder 1, %s17
    %p288 = scmp.lt.s32.totalorder %s17, 3
    %p289 = pnand %p287, %p288
    %p290 = pneg %p289
    // Predicated region
    $region9: #{ectb_forward.1} parent=5 // pred_check
      _
    $region10: #{ectb_forward.1} parent=5 // pred_check_branch
      %292 = sbr.rel (%p289) target = $region12
    $region11: #{ectb_forward.1} parent=5 // pred_region
      %s293 = ssub.s32 %s17, 1
      // Predicated region
      $region13: #{ectb_forward.1} parent=11 // pred_check
        %p294 = pneg %p64
      $region14: #{ectb_forward.1} parent=11 // pred_check_branch
        %296 = sbr.rel (%p294) target = $region16
      $region15: #{ectb_forward.1} parent=11 // pred_region
        _
      $region16: #{ectb_forward.1} parent=11 // pred_fallthru
        _
      // Predicated region
      $region17: #{ectb_forward.1} parent=11 // pred_check
        %p297 = pneg %p85
      $region18: #{ectb_forward.1} parent=11 // pred_check_branch
        %299 = sbr.rel (%p297) target = $region20
      $region19: #{ectb_forward.1} parent=11 // pred_region
        _
      $region20: #{ectb_forward.1} parent=11 // pred_fallthru
        _
      // Predicated region
      $region21: #{ectb_forward.1} parent=11 // pred_check
        %p300 = pneg %p106
      $region22: #{ectb_forward.1} parent=11 // pred_check_branch
        %302 = sbr.rel (%p300) target = $region24
      $region23: #{ectb_forward.1} parent=11 // pred_region
        _
      $region24: #{ectb_forward.1} parent=11 // pred_fallthru
        _
      // Predicated region
      $region25: #{ectb_forward.1} parent=11 // pred_check
        %p303 = pneg %p127
      $region26: #{ectb_forward.1} parent=11 // pred_check_branch
        %305 = sbr.rel (%p303) target = $region28
      $region27: #{ectb_forward.1} parent=11 // pred_region
        _
      $region28: #{ectb_forward.1} parent=11 // pred_fallthru
        _
      // Predicated region
      $region29: #{ectb_forward.1} parent=11 // pred_check
        %p306 = pneg %p148
      $region30: #{ectb_forward.1} parent=11 // pred_check_branch
        %308 = sbr.rel (%p306) target = $region32
      $region31: #{ectb_forward.1} parent=11 // pred_region
        _
      $region32: #{ectb_forward.1} parent=11 // pred_fallthru
        _
      // Predicated region
      $region33: #{ectb_forward.1} parent=11 // pred_check
        %p309 = pneg %p169
      $region34: #{ectb_forward.1} parent=11 // pred_check_branch
        %311 = sbr.rel (%p309) target = $region36
      $region35: #{ectb_forward.1} parent=11 // pred_region
        _
      $region36: #{ectb_forward.1} parent=11 // pred_fallthru
        _
      // Predicated region
      $region37: #{ectb_forward.1} parent=11 // pred_check
        %p312 = pneg %p190
      $region38: #{ectb_forward.1} parent=11 // pred_check_branch
        %314 = sbr.rel (%p312) target = $region40
      $region39: #{ectb_forward.1} parent=11 // pred_region
        _
      $region40: #{ectb_forward.1} parent=11 // pred_fallthru
        _
      // Predicated region
      $region41: #{ectb_forward.1} parent=11 // pred_check
        %p315 = pneg %p211
      $region42: #{ectb_forward.1} parent=11 // pred_check_branch
        %317 = sbr.rel (%p315) target = $region44
      $region43: #{ectb_forward.1} parent=11 // pred_region
        _
      $region44: #{ectb_forward.1} parent=11 // pred_fallthru
        _
      // Predicated region
      $region45: #{ectb_forward.1} parent=11 // pred_check
        %p318 = pneg %p232
      $region46: #{ectb_forward.1} parent=11 // pred_check_branch
        %320 = sbr.rel (%p318) target = $region48
      $region47: #{ectb_forward.1} parent=11 // pred_region
        _
      $region48: #{ectb_forward.1} parent=11 // pred_fallthru
        _
      // Predicated region
      $region49: #{ectb_forward.1} parent=11 // pred_check
        %p321 = pneg %p253
      $region50: #{ectb_forward.1} parent=11 // pred_check_branch
        %323 = sbr.rel (%p321) target = $region52
      $region51: #{ectb_forward.1} parent=11 // pred_region
        _
      $region52: #{ectb_forward.1} parent=11 // pred_fallthru
        _
    $region12: #{ectb_forward.1} parent=5 // pred_fallthru
      _
    %p324 = scmp.lt.s32.totalorder %s17, 2
    // Predicated region
    $region53: #{ectb_forward.1} parent=5 // pred_check
      %p325 = pneg %p324
    $region54: #{ectb_forward.1} parent=5 // pred_check_branch
      %327 = sbr.rel (%p325) target = $region56
    $region55: #{ectb_forward.1} parent=5 // pred_region
      // Predicated region
      $region57: #{ectb_forward.1} parent=55 // pred_check
        %p328 = pneg %p37
      $region58: #{ectb_forward.1} parent=55 // pred_check_branch
        %330 = sbr.rel (%p328) target = $region60
      $region59: #{ectb_forward.1} parent=55 // pred_region
        %p331 = scmp.lt.s32.totalorder %s17, 1
        %s332 = scalar_select %p331, %s17, 1
        %s333 = smul.addr %s332, 2
        %s334 = smul.addr %s333, 8
        %s335 = scalar_lea.vmem %s0, %s334
      $region60: #{ectb_forward.1} parent=55 // pred_fallthru
        _
    $region56: #{ectb_forward.1} parent=5 // pred_fallthru
      _
    %p336 = scmp.le.s32.totalorder 1, %s17
    %p337 = scmp.lt.s32.totalorder %s17, 3
    %p338 = pnand %p336, %p337
    %p339 = pneg %p338
    // Predicated region
    $region61: #{ectb_forward.1} parent=5 // pred_check
      _
    $region62: #{ectb_forward.1} parent=5 // pred_check_branch
      %341 = sbr.rel (%p338) target = $region64
    $region63: #{ectb_forward.1} parent=5 // pred_region
      %s342 = ssub.s32 %s17, 1
      %p343 = scmp.lt.s32.totalorder %s22, 1
      %s344 = scalar_select %p343, %s22, 1
      %s345 = smul.addr %s344, 2
      %s346 = smul.addr %s345, 8
      %s347 = scalar_lea.vmem %s0, %s346
      %p348 = pneg %p43
      %p349 = pneg %p40
      %p350 = pneg %p64
      %p351 = pneg %p61
      %p352 = pneg %p85
      %p353 = pneg %p82
      %p354 = pneg %p106
      %p355 = pneg %p103
      %p356 = pneg %p127
      %p357 = pneg %p124
      %p358 = pneg %p148
      %p359 = pneg %p145
      %p360 = pneg %p169
      %p361 = pneg %p166
      %p362 = pneg %p190
      %p363 = pneg %p187
      %p364 = pneg %p211
      %p365 = pneg %p208
      %p366 = pneg %p232
      %p367 = pneg %p229
      %p368 = pneg %p253
      %p369 = pneg %p250
      %p370 = pneg %p279
      %p371 = pneg %p276
      %p372 = scmp.lt.s32.totalorder %s22, 1
      %s373 = scalar_select %p372, %s22, 1
      %s374 = smul.addr %s373, 4
      %s375 = smul.addr %s374, 8
      %s376 = scalar_lea.vmem %s11, %s375
      %p377 = scmp.lt.s32.totalorder %s22, 1
      %s378 = scalar_select %p377, %s22, 1
      %s379 = smul.addr %s378, 2
      %s380 = smul.addr %s379, 8
      %s381 = scalar_lea.vmem %s0, %s380
      %p382 = scmp.lt.s32.totalorder %s22, 1
      %s383 = scalar_select %p382, %s22, 1
      %s384 = smul.addr %s383, 4
      %s385 = smul.addr %s384, 8
      %s386 = scalar_lea.vmem %s11, %s385
      %v387 = vld [vmem:[%s381] sm:$0xff]
      %v388 = vld [vmem:[%s381 + $0x8] sm:$0xff]
      %v389 = vld [vmem:[%s1] sm:$0xff]
      %v390 = vld [vmem:[%s1 + $0x8] sm:$0xff]
      %v391 = vld [vmem:[%s2] sm:$0xff]
      %v392 = vld [vmem:[%s2 + $0x8] sm:$0xff]
      %394 = vset.pattern.permute.xlu0 0
      %395 = vperm.xlu0 %394, %v391
      %v396 = vpop.permute.xlu0 %395
      %399 = vset.pattern.permute.xlu0 0
      %400 = vperm.xlu0 %399, %v392
      %v401 = vpop.permute.xlu0 %400
      %vm403 = vcmask 130048
      %v405 = vsel %vm403, %v389, 0
      %v408 = vsel %vm403, %v390, 0
      %410 = vmatprep.subr.mxu0 0.0
      %411 = vmatpush1.msra.mxu0 0.0
      %412 = vmatprep.subr.mxu0 0.0
      %413 = vmatpush1.msra.mxu0 0.0
      %414 = vmatprep.subr.mxu0 0.0
      %415 = vmatpush1.msra.mxu0 0.0
      %416 = vmatprep.subr.mxu0 0.0
      %417 = vmatpush1.msra.mxu0 0.0
      %418 = vmatprep.subr.mxu0 0.0
      %419 = vmatpush1.msra.mxu0 0.0
      %420 = vmatprep.subr.mxu0 0.0
      %421 = vmatpush1.msra.mxu0 0.0
      %422 = vmatprep.subr.mxu0 0.0
      %423 = vmatpush1.msra.mxu0 0.0
      %424 = vmatprep.subr.mxu0 0.0
      %425 = vmatpush1.msra.mxu0 0.0
      %426 = vmatprep.subr.mxu0 0.0
      %427 = vmatpush1.msra.mxu0 0.0
      %428 = vmatprep.subr.mxu0 0.0
      %429 = vmatpush1.msra.mxu0 0.0
      %430 = vmatprep.subr.mxu0 0.0
      %431 = vmatpush1.msra.mxu0 0.0
      %432 = vmatprep.subr.mxu0 0.0
      %433 = vmatpush1.msra.mxu0 0.0
      %434 = vmatprep.subr.mxu0 0.0
      %435 = vmatpush1.msra.mxu0 0.0
      %436 = vmatprep.subr.mxu0 0.0
      %437 = vmatpush1.msra.mxu0 0.0
      %438 = vmatprep.subr.mxu0 0.0
      %439 = vmatpush1.msra.mxu0 %v388
      %440 = vmatprep.subr.mxu0 0.0
      %441 = vmatpush1.msra.mxu0 %v387
      %442 = vmatprep.subr.mxu0 0.0
      %443 = vmatpush2.msra.mxu0 0.0
      %444 = vmatprep.subr.mxu0 0.0
      %445 = vmatpush2.msra.mxu0 0.0
      %446 = vmatprep.subr.mxu0 0.0
      %447 = vmatpush2.msra.mxu0 0.0
      %448 = vmatprep.subr.mxu0 0.0
      %449 = vmatpush2.msra.mxu0 0.0
      %450 = vmatprep.subr.mxu0 0.0
      %451 = vmatpush2.msra.mxu0 0.0
      %452 = vmatprep.subr.mxu0 0.0
      %453 = vmatpush2.msra.mxu0 0.0
      %454 = vmatprep.subr.mxu0 0.0
      %455 = vmatpush2.msra.mxu0 0.0
      %456 = vmatprep.subr.mxu0 0.0
      %457 = vmatpush2.msra.mxu0 0.0
      %458 = vmatprep.subr.mxu0 0.0
      %459 = vmatpush2.msra.mxu0 0.0
      %460 = vmatprep.subr.mxu0 0.0
      %461 = vmatpush2.msra.mxu0 0.0
      %462 = vmatprep.subr.mxu0 0.0
      %463 = vmatpush2.msra.mxu0 0.0
      %464 = vmatprep.subr.mxu0 0.0
      %465 = vmatpush2.msra.mxu0 0.0
      %466 = vmatprep.subr.mxu0 0.0
      %467 = vmatpush2.msra.mxu0 0.0
      %468 = vmatprep.subr.mxu0 0.0
      %469 = vmatpush2.msra.mxu0 0.0
      %470 = vmatprep.subr.mxu0 0.0
      %471 = vmatpush2.msra.mxu0 0.0
      %472 = vmatprep.subr.mxu0 0.0
      %473 = vmatpush2.msra.mxu0 0.0
      %474 = vmatprep.mubr.f32.mxu0 0.0
      %475 = vmatmul.mubr.f32.gmra.mxu0 %v405
      %v476 = vpop.f32.mrf.mxu0
      %v477 = vadd.f32 %v396, %v476
      %v478 = vpop.f32.mrf.mxu0
      %479 = vmatprep.mubr.f32.mxu0 0.0
      %480 = vmatmul.mubr.f32.gmra.mxu0 %v408
      %v481 = vpop.f32.mrf.mxu0
      %v482 = vadd.f32 %v401, %v481
      %v483 = vpop.f32.mrf.mxu0
      %484 = vdwg.mxu0
      %v485 = vld [vmem:[%s3] sm:$0xff]
      %v486 = vld [vmem:[%s3 + $0x8] sm:$0xff]
      %v487 = vld [vmem:[%s4] sm:$0xff]
      %v488 = vld [vmem:[%s4 + $0x8] sm:$0xff]
      %490 = vset.pattern.permute.xlu0 0
      %491 = vperm.xlu0 %490, %v487
      %v492 = vpop.permute.xlu0 %491
      %495 = vset.pattern.permute.xlu0 0
      %496 = vperm.xlu0 %495, %v488
      %v497 = vpop.permute.xlu0 %496
      %v500 = vsel %vm403, %v485, 0
      %v503 = vsel %vm403, %v486, 0
      %505 = vmatprep.subr.mxu0 0.0
      %506 = vmatpush1.msra.mxu0 0.0
      %507 = vmatprep.subr.mxu0 0.0
      %508 = vmatpush1.msra.mxu0 0.0
      %509 = vmatprep.subr.mxu0 0.0
      %510 = vmatpush1.msra.mxu0 0.0
      %511 = vmatprep.subr.mxu0 0.0
      %512 = vmatpush1.msra.mxu0 0.0
      %513 = vmatprep.subr.mxu0 0.0
      %514 = vmatpush1.msra.mxu0 0.0
      %515 = vmatprep.subr.mxu0 0.0
      %516 = vmatpush1.msra.mxu0 0.0
      %517 = vmatprep.subr.mxu0 0.0
      %518 = vmatpush1.msra.mxu0 0.0
      %519 = vmatprep.subr.mxu0 0.0
      %520 = vmatpush1.msra.mxu0 0.0
      %521 = vmatprep.subr.mxu0 0.0
      %522 = vmatpush1.msra.mxu0 0.0
      %523 = vmatprep.subr.mxu0 0.0
      %524 = vmatpush1.msra.mxu0 0.0
      %525 = vmatprep.subr.mxu0 0.0
      %526 = vmatpush1.msra.mxu0 0.0
      %527 = vmatprep.subr.mxu0 0.0
      %528 = vmatpush1.msra.mxu0 0.0
      %529 = vmatprep.subr.mxu0 0.0
      %530 = vmatpush1.msra.mxu0 0.0
      %531 = vmatprep.subr.mxu0 0.0
      %532 = vmatpush1.msra.mxu0 0.0
      %533 = vmatprep.subr.mxu0 0.0
      %534 = vmatpush1.msra.mxu0 %v482
      %535 = vmatprep.subr.mxu0 0.0
      %536 = vmatpush1.msra.mxu0 %v477
      %537 = vmatprep.subr.mxu0 0.0
      %538 = vmatpush2.msra.mxu0 0.0
      %539 = vmatprep.subr.mxu0 0.0
      %540 = vmatpush2.msra.mxu0 0.0
      %541 = vmatprep.subr.mxu0 0.0
      %542 = vmatpush2.msra.mxu0 0.0
      %543 = vmatprep.subr.mxu0 0.0
      %544 = vmatpush2.msra.mxu0 0.0
      %545 = vmatprep.subr.mxu0 0.0
      %546 = vmatpush2.msra.mxu0 0.0
      %547 = vmatprep.subr.mxu0 0.0
      %548 = vmatpush2.msra.mxu0 0.0
      %549 = vmatprep.subr.mxu0 0.0
      %550 = vmatpush2.msra.mxu0 0.0
      %551 = vmatprep.subr.mxu0 0.0
      %552 = vmatpush2.msra.mxu0 0.0
      %553 = vmatprep.subr.mxu0 0.0
      %554 = vmatpush2.msra.mxu0 0.0
      %555 = vmatprep.subr.mxu0 0.0
      %556 = vmatpush2.msra.mxu0 0.0
      %557 = vmatprep.subr.mxu0 0.0
      %558 = vmatpush2.msra.mxu0 0.0
      %559 = vmatprep.subr.mxu0 0.0
      %560 = vmatpush2.msra.mxu0 0.0
      %561 = vmatprep.subr.mxu0 0.0
      %562 = vmatpush2.msra.mxu0 0.0
      %563 = vmatprep.subr.mxu0 0.0
      %564 = vmatpush2.msra.mxu0 0.0
      %565 = vmatprep.subr.mxu0 0.0
      %566 = vmatpush2.msra.mxu0 0.0
      %567 = vmatprep.subr.mxu0 0.0
      %568 = vmatpush2.msra.mxu0 0.0
      %569 = vmatprep.mubr.f32.mxu0 0.0
      %570 = vmatmul.mubr.f32.gmra.mxu0 %v500
      %v571 = vpop.f32.mrf.mxu0
      %v572 = vadd.f32 %v492, %v571
      %v573 = vpop.f32.mrf.mxu0
      %574 = vmatprep.mubr.f32.mxu0 0.0
      %575 = vmatmul.mubr.f32.gmra.mxu0 %v503
      %v576 = vpop.f32.mrf.mxu0
      %v577 = vadd.f32 %v497, %v576
      %v578 = vpop.f32.mrf.mxu0
      %579 = vdwg.mxu0
      %v580 = vld [vmem:[%s5] sm:$0xff]
      %v581 = vld [vmem:[%s5 + $0x8] sm:$0xff]
      %v582 = vld [vmem:[%s6] sm:$0xff]
      %v583 = vld [vmem:[%s6 + $0x8] sm:$0xff]
      %585 = vset.pattern.permute.xlu0 0
      %586 = vperm.xlu0 %585, %v582
      %v587 = vpop.permute.xlu0 %586
      %590 = vset.pattern.permute.xlu0 0
      %591 = vperm.xlu0 %590, %v583
      %v592 = vpop.permute.xlu0 %591
      %v595 = vsel %vm403, %v580, 0
      %v598 = vsel %vm403, %v581, 0
      %600 = vmatprep.subr.mxu0 0.0
      %601 = vmatpush1.msra.mxu0 0.0
      %602 = vmatprep.subr.mxu0 0.0
      %603 = vmatpush1.msra.mxu0 0.0
      %604 = vmatprep.subr.mxu0 0.0
      %605 = vmatpush1.msra.mxu0 0.0
      %606 = vmatprep.subr.mxu0 0.0
      %607 = vmatpush1.msra.mxu0 0.0
      %608 = vmatprep.subr.mxu0 0.0
      %609 = vmatpush1.msra.mxu0 0.0
      %610 = vmatprep.subr.mxu0 0.0
      %611 = vmatpush1.msra.mxu0 0.0
      %612 = vmatprep.subr.mxu0 0.0
      %613 = vmatpush1.msra.mxu0 0.0
      %614 = vmatprep.subr.mxu0 0.0
      %615 = vmatpush1.msra.mxu0 0.0
      %616 = vmatprep.subr.mxu0 0.0
      %617 = vmatpush1.msra.mxu0 0.0
      %618 = vmatprep.subr.mxu0 0.0
      %619 = vmatpush1.msra.mxu0 0.0
      %620 = vmatprep.subr.mxu0 0.0
      %621 = vmatpush1.msra.mxu0 0.0
      %622 = vmatprep.subr.mxu0 0.0
      %623 = vmatpush1.msra.mxu0 0.0
      %624 = vmatprep.subr.mxu0 0.0
      %625 = vmatpush1.msra.mxu0 0.0
      %626 = vmatprep.subr.mxu0 0.0
      %627 = vmatpush1.msra.mxu0 0.0
      %628 = vmatprep.subr.mxu0 0.0
      %629 = vmatpush1.msra.mxu0 %v482
      %630 = vmatprep.subr.mxu0 0.0
      %631 = vmatpush1.msra.mxu0 %v477
      %632 = vmatprep.subr.mxu0 0.0
      %633 = vmatpush2.msra.mxu0 0.0
      %634 = vmatprep.subr.mxu0 0.0
      %635 = vmatpush2.msra.mxu0 0.0
      %636 = vmatprep.subr.mxu0 0.0
      %637 = vmatpush2.msra.mxu0 0.0
      %638 = vmatprep.subr.mxu0 0.0
      %639 = vmatpush2.msra.mxu0 0.0
      %640 = vmatprep.subr.mxu0 0.0
      %641 = vmatpush2.msra.mxu0 0.0
      %642 = vmatprep.subr.mxu0 0.0
      %643 = vmatpush2.msra.mxu0 0.0
      %644 = vmatprep.subr.mxu0 0.0
      %645 = vmatpush2.msra.mxu0 0.0
      %646 = vmatprep.subr.mxu0 0.0
      %647 = vmatpush2.msra.mxu0 0.0
      %648 = vmatprep.subr.mxu0 0.0
      %649 = vmatpush2.msra.mxu0 0.0
      %650 = vmatprep.subr.mxu0 0.0
      %651 = vmatpush2.msra.mxu0 0.0
      %652 = vmatprep.subr.mxu0 0.0
      %653 = vmatpush2.msra.mxu0 0.0
      %654 = vmatprep.subr.mxu0 0.0
      %655 = vmatpush2.msra.mxu0 0.0
      %656 = vmatprep.subr.mxu0 0.0
      %657 = vmatpush2.msra.mxu0 0.0
      %658 = vmatprep.subr.mxu0 0.0
      %659 = vmatpush2.msra.mxu0 0.0
      %660 = vmatprep.subr.mxu0 0.0
      %661 = vmatpush2.msra.mxu0 0.0
      %662 = vmatprep.subr.mxu0 0.0
      %663 = vmatpush2.msra.mxu0 0.0
      %664 = vmatprep.mubr.f32.mxu0 0.0
      %665 = vmatmul.mubr.f32.gmra.mxu0 %v595
      %v666 = vpop.f32.mrf.mxu0
      %v667 = vadd.f32 %v587, %v666
      %v668 = vpop.f32.mrf.mxu0
      %669 = vmatprep.mubr.f32.mxu0 0.0
      %670 = vmatmul.mubr.f32.gmra.mxu0 %v598
      %v671 = vpop.f32.mrf.mxu0
      %v672 = vadd.f32 %v592, %v671
      %v673 = vpop.f32.mrf.mxu0
      %674 = vdwg.mxu0
      %v675 = vld [vmem:[%s7] sm:$0xff]
      %v676 = vld [vmem:[%s7 + $0x8] sm:$0xff]
      %677 = vxpose.xlu0.b32.start [1/16] %v572, 128
      %678 = vxpose.xlu0.b32.cont [2/16] 0.0, 128
      %679 = vxpose.xlu0.b32.cont [3/16] 0.0, 128
      %680 = vxpose.xlu0.b32.cont [4/16] 0.0, 128
      %681 = vxpose.xlu0.b32.cont [5/16] 0.0, 128
      %682 = vxpose.xlu0.b32.cont [6/16] 0.0, 128
      %683 = vxpose.xlu0.b32.cont [7/16] 0.0, 128
      %684 = vxpose.xlu0.b32.cont [8/16] 0.0, 128
      %685 = vxpose.xlu0.b32.cont [9/16] 0.0, 128
      %686 = vxpose.xlu0.b32.cont [10/16] 0.0, 128
      %687 = vxpose.xlu0.b32.cont [11/16] 0.0, 128
      %688 = vxpose.xlu0.b32.cont [12/16] 0.0, 128
      %689 = vxpose.xlu0.b32.cont [13/16] 0.0, 128
      %690 = vxpose.xlu0.b32.cont [14/16] 0.0, 128
      %691 = vxpose.xlu0.b32.cont [15/16] 0.0, 128
      %692 = vxpose.xlu0.b32.end [16/16] 0.0, 128
      %v693 = vpop.trf.xlu0
      %v694 = vpop.trf.xlu0
      %v695 = vpop.trf.xlu0
      %v696 = vpop.trf.xlu0
      %v697 = vpop.trf.xlu0
      %v698 = vpop.trf.xlu0
      %v699 = vpop.trf.xlu0
      %v700 = vpop.trf.xlu0
      %v701 = vpop.trf.xlu0
      %v702 = vpop.trf.xlu0
      %v703 = vpop.trf.xlu0
      %v704 = vpop.trf.xlu0
      %v705 = vpop.trf.xlu0
      %v706 = vpop.trf.xlu0
      %v707 = vpop.trf.xlu0
      %v708 = vpop.trf.xlu0
      %vm709 = vcmask 31744
      %v711 = vsel %vm709, %v693, 0
      %v714 = vsel %vm709, %v694, 0
      %v717 = vsel %vm709, %v695, 0
      %v720 = vsel %vm709, %v696, 0
      %v723 = vsel %vm709, %v697, 0
      %v726 = vsel %vm709, %v698, 0
      %v729 = vsel %vm709, %v699, 0
      %v732 = vsel %vm709, %v700, 0
      %vm734 = vcmask 1043456
      %v736 = vsel %vm734, %v572, 0
      %738 = vmatprep.subr.mxu0 0.0
      %739 = vmatpush1.msra.mxu0 0.0
      %740 = vmatprep.subr.mxu0 0.0
      %741 = vmatpush1.msra.mxu0 0.0
      %742 = vmatprep.subr.mxu0 0.0
      %743 = vmatpush1.msra.mxu0 0.0
      %744 = vmatprep.subr.mxu0 0.0
      %745 = vmatpush1.msra.mxu0 0.0
      %746 = vmatprep.subr.mxu0 0.0
      %747 = vmatpush1.msra.mxu0 0.0
      %748 = vmatprep.subr.mxu0 0.0
      %749 = vmatpush1.msra.mxu0 0.0
      %750 = vmatprep.subr.mxu0 0.0
      %751 = vmatpush1.msra.mxu0 0.0
      %752 = vmatprep.subr.mxu0 0.0
      %753 = vmatpush1.msra.mxu0 0.0
      %754 = vmatprep.subr.mxu0 0.0
      %755 = vmatpush1.msra.mxu0 0.0
      %756 = vmatprep.subr.mxu0 0.0
      %757 = vmatpush1.msra.mxu0 0.0
      %758 = vmatprep.subr.mxu0 0.0
      %759 = vmatpush1.msra.mxu0 0.0
      %760 = vmatprep.subr.mxu0 0.0
      %761 = vmatpush1.msra.mxu0 0.0
      %762 = vmatprep.subr.mxu0 0.0
      %763 = vmatpush1.msra.mxu0 0.0
      %764 = vmatprep.subr.mxu0 0.0
      %765 = vmatpush1.msra.mxu0 0.0
      %766 = vmatprep.subr.mxu0 0.0
      %767 = vmatpush1.msra.mxu0 0.0
      %768 = vmatprep.subr.mxu0 0.0
      %769 = vmatpush1.msra.mxu0 %v736
      %770 = vmatprep.subr.mxu0 0.0
      %771 = vmatpush2.msra.mxu0 0.0
      %772 = vmatprep.subr.mxu0 0.0
      %773 = vmatpush2.msra.mxu0 0.0
      %774 = vmatprep.subr.mxu0 0.0
      %775 = vmatpush2.msra.mxu0 0.0
      %776 = vmatprep.subr.mxu0 0.0
      %777 = vmatpush2.msra.mxu0 0.0
      %778 = vmatprep.subr.mxu0 0.0
      %779 = vmatpush2.msra.mxu0 0.0
      %780 = vmatprep.subr.mxu0 0.0
      %781 = vmatpush2.msra.mxu0 0.0
      %782 = vmatprep.subr.mxu0 0.0
      %783 = vmatpush2.msra.mxu0 0.0
      %784 = vmatprep.subr.mxu0 0.0
      %785 = vmatpush2.msra.mxu0 0.0
      %786 = vmatprep.subr.mxu0 0.0
      %787 = vmatpush2.msra.mxu0 0.0
      %788 = vmatprep.subr.mxu0 0.0
      %789 = vmatpush2.msra.mxu0 0.0
      %790 = vmatprep.subr.mxu0 0.0
      %791 = vmatpush2.msra.mxu0 0.0
      %792 = vmatprep.subr.mxu0 0.0
      %793 = vmatpush2.msra.mxu0 0.0
      %794 = vmatprep.subr.mxu0 0.0
      %795 = vmatpush2.msra.mxu0 0.0
      %796 = vmatprep.subr.mxu0 0.0
      %797 = vmatpush2.msra.mxu0 0.0
      %798 = vmatprep.subr.mxu0 0.0
      %799 = vmatpush2.msra.mxu0 0.0
      %800 = vmatprep.subr.mxu0 0.0
      %801 = vmatpush2.msra.mxu0 0.0
      %802 = vmatprep.mubr.f32.mxu0 0.0
      %803 = vmatmul.mubr.f32.gmra.mxu0 %v711
      %v804 = vpop.f32.mrf.mxu0
      %v805 = vadd.f32 0.0, %v804
      %v806 = vpop.f32.mrf.mxu0
      %807 = vmatprep.mubr.f32.mxu0 0.0
      %808 = vmatmul.mubr.f32.gmra.mxu0 %v714
      %v809 = vpop.f32.mrf.mxu0
      %v810 = vadd.f32 0.0, %v809
      %v811 = vpop.f32.mrf.mxu0
      %812 = vmatprep.mubr.f32.mxu0 0.0
      %813 = vmatmul.mubr.f32.gmra.mxu0 %v717
      %v814 = vpop.f32.mrf.mxu0
      %v815 = vadd.f32 0.0, %v814
      %v816 = vpop.f32.mrf.mxu0
      %817 = vmatprep.mubr.f32.mxu0 0.0
      %818 = vmatmul.mubr.f32.gmra.mxu0 %v720
      %v819 = vpop.f32.mrf.mxu0
      %v820 = vadd.f32 0.0, %v819
      %v821 = vpop.f32.mrf.mxu0
      %822 = vmatprep.mubr.f32.mxu0 0.0
      %823 = vmatmul.mubr.f32.gmra.mxu0 %v723
      %v824 = vpop.f32.mrf.mxu0
      %v825 = vadd.f32 0.0, %v824
      %v826 = vpop.f32.mrf.mxu0
      %827 = vmatprep.mubr.f32.mxu0 0.0
      %828 = vmatmul.mubr.f32.gmra.mxu0 %v726
      %v829 = vpop.f32.mrf.mxu0
      %v830 = vadd.f32 0.0, %v829
      %v831 = vpop.f32.mrf.mxu0
      %832 = vmatprep.mubr.f32.mxu0 0.0
      %833 = vmatmul.mubr.f32.gmra.mxu0 %v729
      %v834 = vpop.f32.mrf.mxu0
      %v835 = vadd.f32 0.0, %v834
      %v836 = vpop.f32.mrf.mxu0
      %837 = vmatprep.mubr.f32.mxu0 0.0
      %838 = vmatmul.mubr.f32.gmra.mxu0 %v732
      %v839 = vpop.f32.mrf.mxu0
      %v840 = vadd.f32 0.0, %v839
      %v841 = vpop.f32.mrf.mxu0
      %842 = vdwg.mxu0
      %vm843 = vcmask 523264
      %v844 = vsel %vm843, %v805, -inf
      %845 = vmax.xlane.f32.xlu0 %v844
      %v846 = vpop.xlane.xlu0 %845
      %v847 = vsel %vm843, %v810, -inf
      %848 = vmax.xlane.f32.xlu0 %v847
      %v849 = vpop.xlane.xlu0 %848
      %v850 = vsel %vm843, %v815, -inf
      %851 = vmax.xlane.f32.xlu0 %v850
      %v852 = vpop.xlane.xlu0 %851
      %v853 = vsel %vm843, %v820, -inf
      %854 = vmax.xlane.f32.xlu0 %v853
      %v855 = vpop.xlane.xlu0 %854
      %v856 = vsel %vm843, %v825, -inf
      %857 = vmax.xlane.f32.xlu0 %v856
      %v858 = vpop.xlane.xlu0 %857
      %v859 = vsel %vm843, %v830, -inf
      %860 = vmax.xlane.f32.xlu0 %v859
      %v861 = vpop.xlane.xlu0 %860
      %v862 = vsel %vm843, %v835, -inf
      %863 = vmax.xlane.f32.xlu0 %v862
      %v864 = vpop.xlane.xlu0 %863
      %v865 = vsel %vm843, %v840, -inf
      %866 = vmax.xlane.f32.xlu0 %v865
      %v867 = vpop.xlane.xlu0 %866
      %v868 = vsub.f32 %v805, %v846
      %v869 = vsub.f32 %v810, %v849
      %v870 = vsub.f32 %v815, %v852
      %v871 = vsub.f32 %v820, %v855
      %v872 = vsub.f32 %v825, %v858
      %v873 = vsub.f32 %v830, %v861
      %v874 = vsub.f32 %v835, %v864
      %v875 = vsub.f32 %v840, %v867
      %v876 = vmul.f32 %v868, 1.442695
      %v877 = vpow.pop %v876
      %v878 = vmul.f32 %v869, 1.442695
      %v879 = vpow.pop %v878
      %v880 = vmul.f32 %v870, 1.442695
      %v881 = vpow.pop %v880
      %v882 = vmul.f32 %v871, 1.442695
      %v883 = vpow.pop %v882
      %v884 = vmul.f32 %v872, 1.442695
      %v885 = vpow.pop %v884
      %v886 = vmul.f32 %v873, 1.442695
      %v887 = vpow.pop %v886
      %v888 = vmul.f32 %v874, 1.442695
      %v889 = vpow.pop %v888
      %v890 = vmul.f32 %v875, 1.442695
      %v891 = vpow.pop %v890
      %v892 = vsel %vm843, %v877, 0.0
      %893 = vadd.xlane.f32.xlu0 %v892
      %v894 = vpop.xlane.xlu0 %893
      %v895 = vsel %vm843, %v879, 0.0
      %896 = vadd.xlane.f32.xlu0 %v895
      %v897 = vpop.xlane.xlu0 %896
      %v898 = vsel %vm843, %v881, 0.0
      %899 = vadd.xlane.f32.xlu0 %v898
      %v900 = vpop.xlane.xlu0 %899
      %v901 = vsel %vm843, %v883, 0.0
      %902 = vadd.xlane.f32.xlu0 %v901
      %v903 = vpop.xlane.xlu0 %902
      %v904 = vsel %vm843, %v885, 0.0
      %905 = vadd.xlane.f32.xlu0 %v904
      %v906 = vpop.xlane.xlu0 %905
      %v907 = vsel %vm843, %v887, 0.0
      %908 = vadd.xlane.f32.xlu0 %v907
      %v909 = vpop.xlane.xlu0 %908
      %v910 = vsel %vm843, %v889, 0.0
      %911 = vadd.xlane.f32.xlu0 %v910
      %v912 = vpop.xlane.xlu0 %911
      %v913 = vsel %vm843, %v891, 0.0
      %914 = vadd.xlane.f32.xlu0 %v913
      %v915 = vpop.xlane.xlu0 %914
      %v916 = vrcp.pop %v894
      %v917 = vrcp.pop %v897
      %v918 = vrcp.pop %v900
      %v919 = vrcp.pop %v903
      %v920 = vrcp.pop %v906
      %v921 = vrcp.pop %v909
      %v922 = vrcp.pop %v912
      %v923 = vrcp.pop %v915
      %v924 = vmul.f32 %v877, %v916
      %v925 = vmul.f32 %v879, %v917
      %v926 = vmul.f32 %v881, %v918
      %v927 = vmul.f32 %v883, %v919
      %v928 = vmul.f32 %v885, %v920
      %v929 = vmul.f32 %v887, %v921
      %v930 = vmul.f32 %v889, %v922
      %v931 = vmul.f32 %v891, %v923
      %v932 = vsel %vm843, %v924, 0.0
      %v933 = vsel %vm843, %v925, 0.0
      %v934 = vadd.f32 %v932, %v933
      %v935 = vsel %vm843, %v926, 0.0
      %v936 = vadd.f32 %v934, %v935
      %v937 = vsel %vm843, %v927, 0.0
      %v938 = vadd.f32 %v936, %v937
      %v939 = vsel %vm843, %v928, 0.0
      %v940 = vadd.f32 %v938, %v939
      %v941 = vsel %vm843, %v929, 0.0
      %v942 = vadd.f32 %v940, %v941
      %v943 = vsel %vm843, %v930, 0.0
      %v944 = vadd.f32 %v942, %v943
      %v945 = vsel %vm843, %v931, 0.0
      %v946 = vadd.f32 %v944, %v945
      %947 = vadd.xlane.f32.xlu0 %v946
      %v948 = vpop.xlane.xlu0 %947
      %v949 = vrot.slane %v948, 4
      %v950 = vadd.f32 %v948, %v949
      %v951 = vrot.slane %v950, 2
      %v952 = vadd.f32 %v950, %v951
      %v953 = vrot.slane %v952, 1
      %v954 = vadd.f32 %v952, %v953
      %s955 = vtos %v954
      %v956 = vrcp.pop 4096.0
      %s957 = vtos %v956
      %s958 = smul.f32 %s955, %s957
      %v959 = vstv %s958
      %v960 = vsub.f32 %v924, %v959
      %v961 = vsub.f32 %v925, %v959
      %v962 = vsub.f32 %v926, %v959
      %v963 = vsub.f32 %v927, %v959
      %v964 = vsub.f32 %v928, %v959
      %v965 = vsub.f32 %v929, %v959
      %v966 = vsub.f32 %v930, %v959
      %v967 = vsub.f32 %v931, %v959
      %v968 = vmul.f32 %v960, %v960
      %v969 = vmul.f32 %v961, %v961
      %v970 = vmul.f32 %v962, %v962
      %v971 = vmul.f32 %v963, %v963
      %v972 = vmul.f32 %v964, %v964
      %v973 = vmul.f32 %v965, %v965
      %v974 = vmul.f32 %v966, %v966
      %v975 = vmul.f32 %v967, %v967
      %v976 = vsel %vm843, %v968, 0.0
      %v977 = vsel %vm843, %v969, 0.0
      %v978 = vadd.f32 %v976, %v977
      %v979 = vsel %vm843, %v970, 0.0
      %v980 = vadd.f32 %v978, %v979
      %v981 = vsel %vm843, %v971, 0.0
      %v982 = vadd.f32 %v980, %v981
      %v983 = vsel %vm843, %v972, 0.0
      %v984 = vadd.f32 %v982, %v983
      %v985 = vsel %vm843, %v973, 0.0
      %v986 = vadd.f32 %v984, %v985
      %v987 = vsel %vm843, %v974, 0.0
      %v988 = vadd.f32 %v986, %v987
      %v989 = vsel %vm843, %v975, 0.0
      %v990 = vadd.f32 %v988, %v989
      %991 = vadd.xlane.f32.xlu0 %v990
      %v992 = vpop.xlane.xlu0 %991
      %v993 = vrot.slane %v992, 4
      %v994 = vadd.f32 %v992, %v993
      %v995 = vrot.slane %v994, 2
      %v996 = vadd.f32 %v994, %v995
      %v997 = vrot.slane %v996, 1
      %v998 = vadd.f32 %v996, %v997
      %s999 = vtos %v998
      %v1000 = vrcp.pop 4096.0
      %s1001 = vtos %v1000
      %s1002 = smul.f32 %s999, %s1001
      %s1003 = sadd.f32 %s1002, 1e-05
      %v1004 = vstv %s1003
      %v1005 = vrsqrt.pop %v1004
      %s1006 = vtos %v1005
      %v1007 = vstv %s1006
      %v1008 = vmul.f32 %v960, %v1007
      %v1009 = vmul.f32 %v961, %v1007
      %v1010 = vmul.f32 %v962, %v1007
      %v1011 = vmul.f32 %v963, %v1007
      %v1012 = vmul.f32 %v964, %v1007
      %v1013 = vmul.f32 %v965, %v1007
      %v1014 = vmul.f32 %v966, %v1007
      %v1015 = vmul.f32 %v967, %v1007
      %1017 = vset.pattern.permute.xlu0 0
      %1018 = vperm.xlu0 %1017, %v675
      %v1019 = vpop.permute.xlu0 %1018
      %v1022 = vsel %vm843, %v667, 0
      %v1025 = vsel %vm843, %v1008, 0
      %v1028 = vsel %vm843, %v1009, 0
      %v1031 = vsel %vm843, %v1010, 0
      %v1034 = vsel %vm843, %v1011, 0
      %v1037 = vsel %vm843, %v1012, 0
      %v1040 = vsel %vm843, %v1013, 0
      %v1043 = vsel %vm843, %v1014, 0
      %v1046 = vsel %vm843, %v1015, 0
      %1048 = vmatprep.subr.mxu0 0.0
      %1049 = vmatpush1.xpose.msra.mxu0 0.0
      %1050 = vmatprep.subr.mxu0 0.0
      %1051 = vmatpush1.xpose.msra.mxu0 0.0
      %1052 = vmatprep.subr.mxu0 0.0
      %1053 = vmatpush1.xpose.msra.mxu0 0.0
      %1054 = vmatprep.subr.mxu0 0.0
      %1055 = vmatpush1.xpose.msra.mxu0 0.0
      %1056 = vmatprep.subr.mxu0 0.0
      %1057 = vmatpush1.xpose.msra.mxu0 0.0
      %1058 = vmatprep.subr.mxu0 0.0
      %1059 = vmatpush1.xpose.msra.mxu0 0.0
      %1060 = vmatprep.subr.mxu0 0.0
      %1061 = vmatpush1.xpose.msra.mxu0 0.0
      %1062 = vmatprep.subr.mxu0 0.0
      %1063 = vmatpush1.xpose.msra.mxu0 0.0
      %1064 = vmatprep.subr.mxu0 0.0
      %1065 = vmatpush1.xpose.msra.mxu0 %v1046
      %1066 = vmatprep.subr.mxu0 0.0
      %1067 = vmatpush1.xpose.msra.mxu0 %v1043
      %1068 = vmatprep.subr.mxu0 0.0
      %1069 = vmatpush1.xpose.msra.mxu0 %v1040
      %1070 = vmatprep.subr.mxu0 0.0
      %1071 = vmatpush1.xpose.msra.mxu0 %v1037
      %1072 = vmatprep.subr.mxu0 0.0
      %1073 = vmatpush1.xpose.msra.mxu0 %v1034
      %1074 = vmatprep.subr.mxu0 0.0
      %1075 = vmatpush1.xpose.msra.mxu0 %v1031
      %1076 = vmatprep.subr.mxu0 0.0
      %1077 = vmatpush1.xpose.msra.mxu0 %v1028
      %1078 = vmatprep.subr.mxu0 0.0
      %1079 = vmatpush1.xpose.msra.mxu0 %v1025
      %1080 = vmatprep.subr.mxu0 0.0
      %1081 = vmatpush2.xpose.msra.mxu0 0.0
      %1082 = vmatprep.subr.mxu0 0.0
      %1083 = vmatpush2.xpose.msra.mxu0 0.0
      %1084 = vmatprep.subr.mxu0 0.0
      %1085 = vmatpush2.xpose.msra.mxu0 0.0
      %1086 = vmatprep.subr.mxu0 0.0
      %1087 = vmatpush2.xpose.msra.mxu0 0.0
      %1088 = vmatprep.subr.mxu0 0.0
      %1089 = vmatpush2.xpose.msra.mxu0 0.0
      %1090 = vmatprep.subr.mxu0 0.0
      %1091 = vmatpush2.xpose.msra.mxu0 0.0
      %1092 = vmatprep.subr.mxu0 0.0
      %1093 = vmatpush2.xpose.msra.mxu0 0.0
      %1094 = vmatprep.subr.mxu0 0.0
      %1095 = vmatpush2.xpose.msra.mxu0 0.0
      %1096 = vmatprep.subr.mxu0 0.0
      %1097 = vmatpush2.xpose.msra.mxu0 0.0
      %1098 = vmatprep.subr.mxu0 0.0
      %1099 = vmatpush2.xpose.msra.mxu0 0.0
      %1100 = vmatprep.subr.mxu0 0.0
      %1101 = vmatpush2.xpose.msra.mxu0 0.0
      %1102 = vmatprep.subr.mxu0 0.0
      %1103 = vmatpush2.xpose.msra.mxu0 0.0
      %1104 = vmatprep.subr.mxu0 0.0
      %1105 = vmatpush2.xpose.msra.mxu0 0.0
      %1106 = vmatprep.subr.mxu0 0.0
      %1107 = vmatpush2.xpose.msra.mxu0 0.0
      %1108 = vmatprep.subr.mxu0 0.0
      %1109 = vmatpush2.xpose.msra.mxu0 0.0
      %1110 = vmatprep.subr.mxu0 0.0
      %1111 = vmatpush2.xpose.msra.mxu0 0.0
      %1112 = vmatprep.mubr.f32.mxu0 0.0
      %1113 = vmatmul.mubr.f32.gmra.mxu0 %v1022
      %v1114 = vpop.f32.mrf.mxu0
      %v1115 = vadd.f32 %v1019, %v1114
      %v1116 = vpop.f32.mrf.mxu0
      %1117 = vdwg.mxu0
      %v1118 = vadd.f32 %v1115, %v477
      %vm1119 = vcmask 519168
      %1120 = vst.msk [vmem:[#allocation2] sm:$0xf] %vm1119, %v1118
      %v1121 = vrot.slane %v572, 4
      %1123 = vxpose.xlu0.b32.start [1/16] %v1121, 128
      %1124 = vxpose.xlu0.b32.cont [2/16] 0.0, 128
      %1125 = vxpose.xlu0.b32.cont [3/16] 0.0, 128
      %1126 = vxpose.xlu0.b32.cont [4/16] 0.0, 128
      %1127 = vxpose.xlu0.b32.cont [5/16] 0.0, 128
      %1128 = vxpose.xlu0.b32.cont [6/16] 0.0, 128
      %1129 = vxpose.xlu0.b32.cont [7/16] 0.0, 128
      %1130 = vxpose.xlu0.b32.cont [8/16] 0.0, 128
      %1131 = vxpose.xlu0.b32.cont [9/16] 0.0, 128
      %1132 = vxpose.xlu0.b32.cont [10/16] 0.0, 128
      %1133 = vxpose.xlu0.b32.cont [11/16] 0.0, 128
      %1134 = vxpose.xlu0.b32.cont [12/16] 0.0, 128
      %1135 = vxpose.xlu0.b32.cont [13/16] 0.0, 128
      %1136 = vxpose.xlu0.b32.cont [14/16] 0.0, 128
      %1137 = vxpose.xlu0.b32.cont [15/16] 0.0, 128
      %1138 = vxpose.xlu0.b32.end [16/16] 0.0, 128
      %v1139 = vpop.trf.xlu0
      %v1140 = vpop.trf.xlu0
      %v1141 = vpop.trf.xlu0
      %v1142 = vpop.trf.xlu0
      %v1143 = vpop.trf.xlu0
      %v1144 = vpop.trf.xlu0
      %v1145 = vpop.trf.xlu0
      %v1146 = vpop.trf.xlu0
      %v1147 = vpop.trf.xlu0
      %v1148 = vpop.trf.xlu0
      %v1149 = vpop.trf.xlu0
      %v1150 = vpop.trf.xlu0
      %v1151 = vpop.trf.xlu0
      %v1152 = vpop.trf.xlu0
      %v1153 = vpop.trf.xlu0
      %v1154 = vpop.trf.xlu0
      %v1156 = vsel %vm709, %v1139, 0
      %v1159 = vsel %vm709, %v1140, 0
      %v1162 = vsel %vm709, %v1141, 0
      %v1165 = vsel %vm709, %v1142, 0
      %v1168 = vsel %vm709, %v1143, 0
      %v1171 = vsel %vm709, %v1144, 0
      %v1174 = vsel %vm709, %v1145, 0
      %v1177 = vsel %vm709, %v1146, 0
      %v1179 = vsel %vm734, %v1121, 0
      %1181 = vmatprep.subr.mxu0 0.0
      %1182 = vmatpush1.msra.mxu0 0.0
      %1183 = vmatprep.subr.mxu0 0.0
      %1184 = vmatpush1.msra.mxu0 0.0
      %1185 = vmatprep.subr.mxu0 0.0
      %1186 = vmatpush1.msra.mxu0 0.0
      %1187 = vmatprep.subr.mxu0 0.0
      %1188 = vmatpush1.msra.mxu0 0.0
      %1189 = vmatprep.subr.mxu0 0.0
      %1190 = vmatpush1.msra.mxu0 0.0
      %1191 = vmatprep.subr.mxu0 0.0
      %1192 = vmatpush1.msra.mxu0 0.0
      %1193 = vmatprep.subr.mxu0 0.0
      %1194 = vmatpush1.msra.mxu0 0.0
      %1195 = vmatprep.subr.mxu0 0.0
      %1196 = vmatpush1.msra.mxu0 0.0
      %1197 = vmatprep.subr.mxu0 0.0
      %1198 = vmatpush1.msra.mxu0 0.0
      %1199 = vmatprep.subr.mxu0 0.0
      %1200 = vmatpush1.msra.mxu0 0.0
      %1201 = vmatprep.subr.mxu0 0.0
      %1202 = vmatpush1.msra.mxu0 0.0
      %1203 = vmatprep.subr.mxu0 0.0
      %1204 = vmatpush1.msra.mxu0 0.0
      %1205 = vmatprep.subr.mxu0 0.0
      %1206 = vmatpush1.msra.mxu0 0.0
      %1207 = vmatprep.subr.mxu0 0.0
      %1208 = vmatpush1.msra.mxu0 0.0
      %1209 = vmatprep.subr.mxu0 0.0
      %1210 = vmatpush1.msra.mxu0 0.0
      %1211 = vmatprep.subr.mxu0 0.0
      %1212 = vmatpush1.msra.mxu0 %v1179
      %1213 = vmatprep.subr.mxu0 0.0
      %1214 = vmatpush2.msra.mxu0 0.0
      %1215 = vmatprep.subr.mxu0 0.0
      %1216 = vmatpush2.msra.mxu0 0.0
      %1217 = vmatprep.subr.mxu0 0.0
      %1218 = vmatpush2.msra.mxu0 0.0
      %1219 = vmatprep.subr.mxu0 0.0
      %1220 = vmatpush2.msra.mxu0 0.0
      %1221 = vmatprep.subr.mxu0 0.0
      %1222 = vmatpush2.msra.mxu0 0.0
      %1223 = vmatprep.subr.mxu0 0.0
      %1224 = vmatpush2.msra.mxu0 0.0
      %1225 = vmatprep.subr.mxu0 0.0
      %1226 = vmatpush2.msra.mxu0 0.0
      %1227 = vmatprep.subr.mxu0 0.0
      %1228 = vmatpush2.msra.mxu0 0.0
      %1229 = vmatprep.subr.mxu0 0.0
      %1230 = vmatpush2.msra.mxu0 0.0
      %1231 = vmatprep.subr.mxu0 0.0
      %1232 = vmatpush2.msra.mxu0 0.0
      %1233 = vmatprep.subr.mxu0 0.0
      %1234 = vmatpush2.msra.mxu0 0.0
      %1235 = vmatprep.subr.mxu0 0.0
      %1236 = vmatpush2.msra.mxu0 0.0
      %1237 = vmatprep.subr.mxu0 0.0
      %1238 = vmatpush2.msra.mxu0 0.0
      %1239 = vmatprep.subr.mxu0 0.0
      %1240 = vmatpush2.msra.mxu0 0.0
      %1241 = vmatprep.subr.mxu0 0.0
      %1242 = vmatpush2.msra.mxu0 0.0
      %1243 = vmatprep.subr.mxu0 0.0
      %1244 = vmatpush2.msra.mxu0 0.0
      %1245 = vmatprep.mubr.f32.mxu0 0.0
      %1246 = vmatmul.mubr.f32.gmra.mxu0 %v1156
      %v1247 = vpop.f32.mrf.mxu0
      %v1248 = vadd.f32 0.0, %v1247
      %v1249 = vpop.f32.mrf.mxu0
      %1250 = vmatprep.mubr.f32.mxu0 0.0
      %1251 = vmatmul.mubr.f32.gmra.mxu0 %v1159
      %v1252 = vpop.f32.mrf.mxu0
      %v1253 = vadd.f32 0.0, %v1252
      %v1254 = vpop.f32.mrf.mxu0
      %1255 = vmatprep.mubr.f32.mxu0 0.0
      %1256 = vmatmul.mubr.f32.gmra.mxu0 %v1162
      %v1257 = vpop.f32.mrf.mxu0
      %v1258 = vadd.f32 0.0, %v1257
      %v1259 = vpop.f32.mrf.mxu0
      %1260 = vmatprep.mubr.f32.mxu0 0.0
      %1261 = vmatmul.mubr.f32.gmra.mxu0 %v1165
      %v1262 = vpop.f32.mrf.mxu0
      %v1263 = vadd.f32 0.0, %v1262
      %v1264 = vpop.f32.mrf.mxu0
      %1265 = vmatprep.mubr.f32.mxu0 0.0
      %1266 = vmatmul.mubr.f32.gmra.mxu0 %v1168
      %v1267 = vpop.f32.mrf.mxu0
      %v1268 = vadd.f32 0.0, %v1267
      %v1269 = vpop.f32.mrf.mxu0
      %1270 = vmatprep.mubr.f32.mxu0 0.0
      %1271 = vmatmul.mubr.f32.gmra.mxu0 %v1171
      %v1272 = vpop.f32.mrf.mxu0
      %v1273 = vadd.f32 0.0, %v1272
      %v1274 = vpop.f32.mrf.mxu0
      %1275 = vmatprep.mubr.f32.mxu0 0.0
      %1276 = vmatmul.mubr.f32.gmra.mxu0 %v1174
      %v1277 = vpop.f32.mrf.mxu0
      %v1278 = vadd.f32 0.0, %v1277
      %v1279 = vpop.f32.mrf.mxu0
      %1280 = vmatprep.mubr.f32.mxu0 0.0
      %1281 = vmatmul.mubr.f32.gmra.mxu0 %v1177
      %v1282 = vpop.f32.mrf.mxu0
      %v1283 = vadd.f32 0.0, %v1282
      %v1284 = vpop.f32.mrf.mxu0
      %1285 = vdwg.mxu0
      %v1286 = vsel %vm843, %v1248, -inf
      %1287 = vmax.xlane.f32.xlu0 %v1286
      %v1288 = vpop.xlane.xlu0 %1287
      %v1289 = vsel %vm843, %v1253, -inf
      %1290 = vmax.xlane.f32.xlu0 %v1289
      %v1291 = vpop.xlane.xlu0 %1290
      %v1292 = vsel %vm843, %v1258, -inf
      %1293 = vmax.xlane.f32.xlu0 %v1292
      %v1294 = vpop.xlane.xlu0 %1293
      %v1295 = vsel %vm843, %v1263, -inf
      %1296 = vmax.xlane.f32.xlu0 %v1295
      %v1297 = vpop.xlane.xlu0 %1296
      %v1298 = vsel %vm843, %v1268, -inf
      %1299 = vmax.xlane.f32.xlu0 %v1298
      %v1300 = vpop.xlane.xlu0 %1299
      %v1301 = vsel %vm843, %v1273, -inf
      %1302 = vmax.xlane.f32.xlu0 %v1301
      %v1303 = vpop.xlane.xlu0 %1302
      %v1304 = vsel %vm843, %v1278, -inf
      %1305 = vmax.xlane.f32.xlu0 %v1304
      %v1306 = vpop.xlane.xlu0 %1305
      %v1307 = vsel %vm843, %v1283, -inf
      %1308 = vmax.xlane.f32.xlu0 %v1307
      %v1309 = vpop.xlane.xlu0 %1308
      %v1310 = vsub.f32 %v1248, %v1288
      %v1311 = vsub.f32 %v1253, %v1291
      %v1312 = vsub.f32 %v1258, %v1294
      %v1313 = vsub.f32 %v1263, %v1297
      %v1314 = vsub.f32 %v1268, %v1300
      %v1315 = vsub.f32 %v1273, %v1303
      %v1316 = vsub.f32 %v1278, %v1306
      %v1317 = vsub.f32 %v1283, %v1309
      %v1318 = vmul.f32 %v1310, 1.442695
      %v1319 = vpow.pop %v1318
      %v1320 = vmul.f32 %v1311, 1.442695
      %v1321 = vpow.pop %v1320
      %v1322 = vmul.f32 %v1312, 1.442695
      %v1323 = vpow.pop %v1322
      %v1324 = vmul.f32 %v1313, 1.442695
      %v1325 = vpow.pop %v1324
      %v1326 = vmul.f32 %v1314, 1.442695
      %v1327 = vpow.pop %v1326
      %v1328 = vmul.f32 %v1315, 1.442695
      %v1329 = vpow.pop %v1328
      %v1330 = vmul.f32 %v1316, 1.442695
      %v1331 = vpow.pop %v1330
      %v1332 = vmul.f32 %v1317, 1.442695
      %v1333 = vpow.pop %v1332
      %v1334 = vsel %vm843, %v1319, 0.0
      %1335 = vadd.xlane.f32.xlu0 %v1334
      %v1336 = vpop.xlane.xlu0 %1335
      %v1337 = vsel %vm843, %v1321, 0.0
      %1338 = vadd.xlane.f32.xlu0 %v1337
      %v1339 = vpop.xlane.xlu0 %1338
      %v1340 = vsel %vm843, %v1323, 0.0
      %1341 = vadd.xlane.f32.xlu0 %v1340
      %v1342 = vpop.xlane.xlu0 %1341
      %v1343 = vsel %vm843, %v1325, 0.0
      %1344 = vadd.xlane.f32.xlu0 %v1343
      %v1345 = vpop.xlane.xlu0 %1344
      %v1346 = vsel %vm843, %v1327, 0.0
      %1347 = vadd.xlane.f32.xlu0 %v1346
      %v1348 = vpop.xlane.xlu0 %1347
      %v1349 = vsel %vm843, %v1329, 0.0
      %1350 = vadd.xlane.f32.xlu0 %v1349
      %v1351 = vpop.xlane.xlu0 %1350
      %v1352 = vsel %vm843, %v1331, 0.0
      %1353 = vadd.xlane.f32.xlu0 %v1352
      %v1354 = vpop.xlane.xlu0 %1353
      %v1355 = vsel %vm843, %v1333, 0.0
      %1356 = vadd.xlane.f32.xlu0 %v1355
      %v1357 = vpop.xlane.xlu0 %1356
      %v1358 = vrcp.pop %v1336
      %v1359 = vrcp.pop %v1339
      %v1360 = vrcp.pop %v1342
      %v1361 = vrcp.pop %v1345
      %v1362 = vrcp.pop %v1348
      %v1363 = vrcp.pop %v1351
      %v1364 = vrcp.pop %v1354
      %v1365 = vrcp.pop %v1357
      %v1366 = vmul.f32 %v1319, %v1358
      %v1367 = vmul.f32 %v1321, %v1359
      %v1368 = vmul.f32 %v1323, %v1360
      %v1369 = vmul.f32 %v1325, %v1361
      %v1370 = vmul.f32 %v1327, %v1362
      %v1371 = vmul.f32 %v1329, %v1363
      %v1372 = vmul.f32 %v1331, %v1364
      %v1373 = vmul.f32 %v1333, %v1365
      %v1374 = vsel %vm843, %v1366, 0.0
      %v1375 = vsel %vm843, %v1367, 0.0
      %v1376 = vadd.f32 %v1374, %v1375
      %v1377 = vsel %vm843, %v1368, 0.0
      %v1378 = vadd.f32 %v1376, %v1377
      %v1379 = vsel %vm843, %v1369, 0.0
      %v1380 = vadd.f32 %v1378, %v1379
      %v1381 = vsel %vm843, %v1370, 0.0
      %v1382 = vadd.f32 %v1380, %v1381
      %v1383 = vsel %vm843, %v1371, 0.0
      %v1384 = vadd.f32 %v1382, %v1383
      %v1385 = vsel %vm843, %v1372, 0.0
      %v1386 = vadd.f32 %v1384, %v1385
      %v1387 = vsel %vm843, %v1373, 0.0
      %v1388 = vadd.f32 %v1386, %v1387
      %1389 = vadd.xlane.f32.xlu0 %v1388
      %v1390 = vpop.xlane.xlu0 %1389
      %v1391 = vrot.slane %v1390, 4
      %v1392 = vadd.f32 %v1390, %v1391
      %v1393 = vrot.slane %v1392, 2
      %v1394 = vadd.f32 %v1392, %v1393
      %v1395 = vrot.slane %v1394, 1
      %v1396 = vadd.f32 %v1394, %v1395
      %s1397 = vtos %v1396
      %v1398 = vrcp.pop 4096.0
      %s1399 = vtos %v1398
      %s1400 = smul.f32 %s1397, %s1399
      %v1401 = vstv %s1400
      %v1402 = vsub.f32 %v1366, %v1401
      %v1403 = vsub.f32 %v1367, %v1401
      %v1404 = vsub.f32 %v1368, %v1401
      %v1405 = vsub.f32 %v1369, %v1401
      %v1406 = vsub.f32 %v1370, %v1401
      %v1407 = vsub.f32 %v1371, %v1401
      %v1408 = vsub.f32 %v1372, %v1401
      %v1409 = vsub.f32 %v1373, %v1401
      %v1410 = vmul.f32 %v1402, %v1402
      %v1411 = vmul.f32 %v1403, %v1403
      %v1412 = vmul.f32 %v1404, %v1404
      %v1413 = vmul.f32 %v1405, %v1405
      %v1414 = vmul.f32 %v1406, %v1406
      %v1415 = vmul.f32 %v1407, %v1407
      %v1416 = vmul.f32 %v1408, %v1408
      %v1417 = vmul.f32 %v1409, %v1409
      %v1418 = vsel %vm843, %v1410, 0.0
      %v1419 = vsel %vm843, %v1411, 0.0
      %v1420 = vadd.f32 %v1418, %v1419
      %v1421 = vsel %vm843, %v1412, 0.0
      %v1422 = vadd.f32 %v1420, %v1421
      %v1423 = vsel %vm843, %v1413, 0.0
      %v1424 = vadd.f32 %v1422, %v1423
      %v1425 = vsel %vm843, %v1414, 0.0
      %v1426 = vadd.f32 %v1424, %v1425
      %v1427 = vsel %vm843, %v1415, 0.0
      %v1428 = vadd.f32 %v1426, %v1427
      %v1429 = vsel %vm843, %v1416, 0.0
      %v1430 = vadd.f32 %v1428, %v1429
      %v1431 = vsel %vm843, %v1417, 0.0
      %v1432 = vadd.f32 %v1430, %v1431
      %1433 = vadd.xlane.f32.xlu0 %v1432
      %v1434 = vpop.xlane.xlu0 %1433
      %v1435 = vrot.slane %v1434, 4
      %v1436 = vadd.f32 %v1434, %v1435
      %v1437 = vrot.slane %v1436, 2
      %v1438 = vadd.f32 %v1436, %v1437
      %v1439 = vrot.slane %v1438, 1
      %v1440 = vadd.f32 %v1438, %v1439
      %s1441 = vtos %v1440
      %v1442 = vrcp.pop 4096.0
      %s1443 = vtos %v1442
      %s1444 = smul.f32 %s1441, %s1443
      %s1445 = sadd.f32 %s1444, 1e-05
      %v1446 = vstv %s1445
      %v1447 = vrsqrt.pop %v1446
      %s1448 = vtos %v1447
      %v1449 = vstv %s1448
      %v1450 = vmul.f32 %v1402, %v1449
      %v1451 = vmul.f32 %v1403, %v1449
      %v1452 = vmul.f32 %v1404, %v1449
      %v1453 = vmul.f32 %v1405, %v1449
      %v1454 = vmul.f32 %v1406, %v1449
      %v1455 = vmul.f32 %v1407, %v1449
      %v1456 = vmul.f32 %v1408, %v1449
      %v1457 = vmul.f32 %v1409, %v1449
      %v1458 = vrot.slane %v667, 4
      %v1459 = vrot.slane %v1019, 4
      %v1461 = vsel %vm843, %v1458, 0
      %v1464 = vsel %vm843, %v1450, 0
      %v1467 = vsel %vm843, %v1451, 0
      %v1470 = vsel %vm843, %v1452, 0
      %v1473 = vsel %vm843, %v1453, 0
      %v1476 = vsel %vm843, %v1454, 0
      %v1479 = vsel %vm843, %v1455, 0
      %v1482 = vsel %vm843, %v1456, 0
      %v1485 = vsel %vm843, %v1457, 0
      %1487 = vmatprep.subr.mxu0 0.0
      %1488 = vmatpush1.xpose.msra.mxu0 0.0
      %1489 = vmatprep.subr.mxu0 0.0
      %1490 = vmatpush1.xpose.msra.mxu0 0.0
      %1491 = vmatprep.subr.mxu0 0.0
      %1492 = vmatpush1.xpose.msra.mxu0 0.0
      %1493 = vmatprep.subr.mxu0 0.0
      %1494 = vmatpush1.xpose.msra.mxu0 0.0
      %1495 = vmatprep.subr.mxu0 0.0
      %1496 = vmatpush1.xpose.msra.mxu0 0.0
      %1497 = vmatprep.subr.mxu0 0.0
      %1498 = vmatpush1.xpose.msra.mxu0 0.0
      %1499 = vmatprep.subr.mxu0 0.0
      %1500 = vmatpush1.xpose.msra.mxu0 0.0
      %1501 = vmatprep.subr.mxu0 0.0
      %1502 = vmatpush1.xpose.msra.mxu0 0.0
      %1503 = vmatprep.subr.mxu0 0.0
      %1504 = vmatpush1.xpose.msra.mxu0 %v1485
      %1505 = vmatprep.subr.mxu0 0.0
      %1506 = vmatpush1.xpose.msra.mxu0 %v1482
      %1507 = vmatprep.subr.mxu0 0.0
      %1508 = vmatpush1.xpose.msra.mxu0 %v1479
      %1509 = vmatprep.subr.mxu0 0.0
      %1510 = vmatpush1.xpose.msra.mxu0 %v1476
      %1511 = vmatprep.subr.mxu0 0.0
      %1512 = vmatpush1.xpose.msra.mxu0 %v1473
      %1513 = vmatprep.subr.mxu0 0.0
      %1514 = vmatpush1.xpose.msra.mxu0 %v1470
      %1515 = vmatprep.subr.mxu0 0.0
      %1516 = vmatpush1.xpose.msra.mxu0 %v1467
      %1517 = vmatprep.subr.mxu0 0.0
      %1518 = vmatpush1.xpose.msra.mxu0 %v1464
      %1519 = vmatprep.subr.mxu0 0.0
      %1520 = vmatpush2.xpose.msra.mxu0 0.0
      %1521 = vmatprep.subr.mxu0 0.0
      %1522 = vmatpush2.xpose.msra.mxu0 0.0
      %1523 = vmatprep.subr.mxu0 0.0
      %1524 = vmatpush2.xpose.msra.mxu0 0.0
      %1525 = vmatprep.subr.mxu0 0.0
      %1526 = vmatpush2.xpose.msra.mxu0 0.0
      %1527 = vmatprep.subr.mxu0 0.0
      %1528 = vmatpush2.xpose.msra.mxu0 0.0
      %1529 = vmatprep.subr.mxu0 0.0
      %1530 = vmatpush2.xpose.msra.mxu0 0.0
      %1531 = vmatprep.subr.mxu0 0.0
      %1532 = vmatpush2.xpose.msra.mxu0 0.0
      %1533 = vmatprep.subr.mxu0 0.0
      %1534 = vmatpush2.xpose.msra.mxu0 0.0
      %1535 = vmatprep.subr.mxu0 0.0
      %1536 = vmatpush2.xpose.msra.mxu0 0.0
      %1537 = vmatprep.subr.mxu0 0.0
      %1538 = vmatpush2.xpose.msra.mxu0 0.0
      %1539 = vmatprep.subr.mxu0 0.0
      %1540 = vmatpush2.xpose.msra.mxu0 0.0
      %1541 = vmatprep.subr.mxu0 0.0
      %1542 = vmatpush2.xpose.msra.mxu0 0.0
      %1543 = vmatprep.subr.mxu0 0.0
      %1544 = vmatpush2.xpose.msra.mxu0 0.0
      %1545 = vmatprep.subr.mxu0 0.0
      %1546 = vmatpush2.xpose.msra.mxu0 0.0
      %1547 = vmatprep.subr.mxu0 0.0
      %1548 = vmatpush2.xpose.msra.mxu0 0.0
      %1549 = vmatprep.subr.mxu0 0.0
      %1550 = vmatpush2.xpose.msra.mxu0 0.0
      %1551 = vmatprep.mubr.f32.mxu0 0.0
      %1552 = vmatmul.mubr.f32.gmra.mxu0 %v1461
      %v1553 = vpop.f32.mrf.mxu0
      %v1554 = vadd.f32 %v1459, %v1553
      %v1555 = vpop.f32.mrf.mxu0
      %1556 = vdwg.mxu0
      %v1558 = vrot.slane %v477, 4
      %v1560 = vadd.f32 %v1554, %v1558
      %1561 = vst.msk [vmem:[#allocation2 + $0x4] sm:$0xf] %vm1119, %v1560
      %1562 = vxpose.xlu0.b32.start [1/16] %v577, 128
      %1563 = vxpose.xlu0.b32.cont [2/16] 0.0, 128
      %1564 = vxpose.xlu0.b32.cont [3/16] 0.0, 128
      %1565 = vxpose.xlu0.b32.cont [4/16] 0.0, 128
      %1566 = vxpose.xlu0.b32.cont [5/16] 0.0, 128
      %1567 = vxpose.xlu0.b32.cont [6/16] 0.0, 128
      %1568 = vxpose.xlu0.b32.cont [7/16] 0.0, 128
      %1569 = vxpose.xlu0.b32.cont [8/16] 0.0, 128
      %1570 = vxpose.xlu0.b32.cont [9/16] 0.0, 128
      %1571 = vxpose.xlu0.b32.cont [10/16] 0.0, 128
      %1572 = vxpose.xlu0.b32.cont [11/16] 0.0, 128
      %1573 = vxpose.xlu0.b32.cont [12/16] 0.0, 128
      %1574 = vxpose.xlu0.b32.cont [13/16] 0.0, 128
      %1575 = vxpose.xlu0.b32.cont [14/16] 0.0, 128
      %1576 = vxpose.xlu0.b32.cont [15/16] 0.0, 128
      %1577 = vxpose.xlu0.b32.end [16/16] 0.0, 128
      %v1578 = vpop.trf.xlu0
      %v1579 = vpop.trf.xlu0
      %v1580 = vpop.trf.xlu0
      %v1581 = vpop.trf.xlu0
      %v1582 = vpop.trf.xlu0
      %v1583 = vpop.trf.xlu0
      %v1584 = vpop.trf.xlu0
      %v1585 = vpop.trf.xlu0
      %v1586 = vpop.trf.xlu0
      %v1587 = vpop.trf.xlu0
      %v1588 = vpop.trf.xlu0
      %v1589 = vpop.trf.xlu0
      %v1590 = vpop.trf.xlu0
      %v1591 = vpop.trf.xlu0
      %v1592 = vpop.trf.xlu0
      %v1593 = vpop.trf.xlu0
      %v1595 = vsel %vm709, %v1578, 0
      %v1598 = vsel %vm709, %v1579, 0
      %v1601 = vsel %vm709, %v1580, 0
      %v1604 = vsel %vm709, %v1581, 0
      %v1607 = vsel %vm709, %v1582, 0
      %v1610 = vsel %vm709, %v1583, 0
      %v1613 = vsel %vm709, %v1584, 0
      %v1616 = vsel %vm709, %v1585, 0
      %v1619 = vsel %vm734, %v577, 0
      %1621 = vmatprep.subr.mxu0 0.0
      %1622 = vmatpush1.msra.mxu0 0.0
      %1623 = vmatprep.subr.mxu0 0.0
      %1624 = vmatpush1.msra.mxu0 0.0
      %1625 = vmatprep.subr.mxu0 0.0
      %1626 = vmatpush1.msra.mxu0 0.0
      %1627 = vmatprep.subr.mxu0 0.0
      %1628 = vmatpush1.msra.mxu0 0.0
      %1629 = vmatprep.subr.mxu0 0.0
      %1630 = vmatpush1.msra.mxu0 0.0
      %1631 = vmatprep.subr.mxu0 0.0
      %1632 = vmatpush1.msra.mxu0 0.0
      %1633 = vmatprep.subr.mxu0 0.0
      %1634 = vmatpush1.msra.mxu0 0.0
      %1635 = vmatprep.subr.mxu0 0.0
      %1636 = vmatpush1.msra.mxu0 0.0
      %1637 = vmatprep.subr.mxu0 0.0
      %1638 = vmatpush1.msra.mxu0 0.0
      %1639 = vmatprep.subr.mxu0 0.0
      %1640 = vmatpush1.msra.mxu0 0.0
      %1641 = vmatprep.subr.mxu0 0.0
      %1642 = vmatpush1.msra.mxu0 0.0
      %1643 = vmatprep.subr.mxu0 0.0
      %1644 = vmatpush1.msra.mxu0 0.0
      %1645 = vmatprep.subr.mxu0 0.0
      %1646 = vmatpush1.msra.mxu0 0.0
      %1647 = vmatprep.subr.mxu0 0.0
      %1648 = vmatpush1.msra.mxu0 0.0
      %1649 = vmatprep.subr.mxu0 0.0
      %1650 = vmatpush1.msra.mxu0 0.0
      %1651 = vmatprep.subr.mxu0 0.0
      %1652 = vmatpush1.msra.mxu0 %v1619
      %1653 = vmatprep.subr.mxu0 0.0
      %1654 = vmatpush2.msra.mxu0 0.0
      %1655 = vmatprep.subr.mxu0 0.0
      %1656 = vmatpush2.msra.mxu0 0.0
      %1657 = vmatprep.subr.mxu0 0.0
      %1658 = vmatpush2.msra.mxu0 0.0
      %1659 = vmatprep.subr.mxu0 0.0
      %1660 = vmatpush2.msra.mxu0 0.0
      %1661 = vmatprep.subr.mxu0 0.0
      %1662 = vmatpush2.msra.mxu0 0.0
      %1663 = vmatprep.subr.mxu0 0.0
      %1664 = vmatpush2.msra.mxu0 0.0
      %1665 = vmatprep.subr.mxu0 0.0
      %1666 = vmatpush2.msra.mxu0 0.0
      %1667 = vmatprep.subr.mxu0 0.0
      %1668 = vmatpush2.msra.mxu0 0.0
      %1669 = vmatprep.subr.mxu0 0.0
      %1670 = vmatpush2.msra.mxu0 0.0
      %1671 = vmatprep.subr.mxu0 0.0
      %1672 = vmatpush2.msra.mxu0 0.0
      %1673 = vmatprep.subr.mxu0 0.0
      %1674 = vmatpush2.msra.mxu0 0.0
      %1675 = vmatprep.subr.mxu0 0.0
      %1676 = vmatpush2.msra.mxu0 0.0
      %1677 = vmatprep.subr.mxu0 0.0
      %1678 = vmatpush2.msra.mxu0 0.0
      %1679 = vmatprep.subr.mxu0 0.0
      %1680 = vmatpush2.msra.mxu0 0.0
      %1681 = vmatprep.subr.mxu0 0.0
      %1682 = vmatpush2.msra.mxu0 0.0
      %1683 = vmatprep.subr.mxu0 0.0
      %1684 = vmatpush2.msra.mxu0 0.0
      %1685 = vmatprep.mubr.f32.mxu0 0.0
      %1686 = vmatmul.mubr.f32.gmra.mxu0 %v1595
      %v1687 = vpop.f32.mrf.mxu0
      %v1688 = vadd.f32 0.0, %v1687
      %v1689 = vpop.f32.mrf.mxu0
      %1690 = vmatprep.mubr.f32.mxu0 0.0
      %1691 = vmatmul.mubr.f32.gmra.mxu0 %v1598
      %v1692 = vpop.f32.mrf.mxu0
      %v1693 = vadd.f32 0.0, %v1692
      %v1694 = vpop.f32.mrf.mxu0
      %1695 = vmatprep.mubr.f32.mxu0 0.0
      %1696 = vmatmul.mubr.f32.gmra.mxu0 %v1601
      %v1697 = vpop.f32.mrf.mxu0
      %v1698 = vadd.f32 0.0, %v1697
      %v1699 = vpop.f32.mrf.mxu0
      %1700 = vmatprep.mubr.f32.mxu0 0.0
      %1701 = vmatmul.mubr.f32.gmra.mxu0 %v1604
      %v1702 = vpop.f32.mrf.mxu0
      %v1703 = vadd.f32 0.0, %v1702
      %v1704 = vpop.f32.mrf.mxu0
      %1705 = vmatprep.mubr.f32.mxu0 0.0
      %1706 = vmatmul.mubr.f32.gmra.mxu0 %v1607
      %v1707 = vpop.f32.mrf.mxu0
      %v1708 = vadd.f32 0.0, %v1707
      %v1709 = vpop.f32.mrf.mxu0
      %1710 = vmatprep.mubr.f32.mxu0 0.0
      %1711 = vmatmul.mubr.f32.gmra.mxu0 %v1610
      %v1712 = vpop.f32.mrf.mxu0
      %v1713 = vadd.f32 0.0, %v1712
      %v1714 = vpop.f32.mrf.mxu0
      %1715 = vmatprep.mubr.f32.mxu0 0.0
      %1716 = vmatmul.mubr.f32.gmra.mxu0 %v1613
      %v1717 = vpop.f32.mrf.mxu0
      %v1718 = vadd.f32 0.0, %v1717
      %v1719 = vpop.f32.mrf.mxu0
      %1720 = vmatprep.mubr.f32.mxu0 0.0
      %1721 = vmatmul.mubr.f32.gmra.mxu0 %v1616
      %v1722 = vpop.f32.mrf.mxu0
      %v1723 = vadd.f32 0.0, %v1722
      %v1724 = vpop.f32.mrf.mxu0
      %1725 = vdwg.mxu0
      %v1726 = vsel %vm843, %v1688, -inf
      %1727 = vmax.xlane.f32.xlu0 %v1726
      %v1728 = vpop.xlane.xlu0 %1727
      %v1729 = vsel %vm843, %v1693, -inf
      %1730 = vmax.xlane.f32.xlu0 %v1729
      %v1731 = vpop.xlane.xlu0 %1730
      %v1732 = vsel %vm843, %v1698, -inf
      %1733 = vmax.xlane.f32.xlu0 %v1732
      %v1734 = vpop.xlane.xlu0 %1733
      %v1735 = vsel %vm843, %v1703, -inf
      %1736 = vmax.xlane.f32.xlu0 %v1735
      %v1737 = vpop.xlane.xlu0 %1736
      %v1738 = vsel %vm843, %v1708, -inf
      %1739 = vmax.xlane.f32.xlu0 %v1738
      %v1740 = vpop.xlane.xlu0 %1739
      %v1741 = vsel %vm843, %v1713, -inf
      %1742 = vmax.xlane.f32.xlu0 %v1741
      %v1743 = vpop.xlane.xlu0 %1742
      %v1744 = vsel %vm843, %v1718, -inf
      %1745 = vmax.xlane.f32.xlu0 %v1744
      %v1746 = vpop.xlane.xlu0 %1745
      %v1747 = vsel %vm843, %v1723, -inf
      %1748 = vmax.xlane.f32.xlu0 %v1747
      %v1749 = vpop.xlane.xlu0 %1748
      %v1750 = vsub.f32 %v1688, %v1728
      %v1751 = vsub.f32 %v1693, %v1731
      %v1752 = vsub.f32 %v1698, %v1734
      %v1753 = vsub.f32 %v1703, %v1737
      %v1754 = vsub.f32 %v1708, %v1740
      %v1755 = vsub.f32 %v1713, %v1743
      %v1756 = vsub.f32 %v1718, %v1746
      %v1757 = vsub.f32 %v1723, %v1749
      %v1758 = vmul.f32 %v1750, 1.442695
      %v1759 = vpow.pop %v1758
      %v1760 = vmul.f32 %v1751, 1.442695
      %v1761 = vpow.pop %v1760
      %v1762 = vmul.f32 %v1752, 1.442695
      %v1763 = vpow.pop %v1762
      %v1764 = vmul.f32 %v1753, 1.442695
      %v1765 = vpow.pop %v1764
      %v1766 = vmul.f32 %v1754, 1.442695
      %v1767 = vpow.pop %v1766
      %v1768 = vmul.f32 %v1755, 1.442695
      %v1769 = vpow.pop %v1768
      %v1770 = vmul.f32 %v1756, 1.442695
      %v1771 = vpow.pop %v1770
      %v1772 = vmul.f32 %v1757, 1.442695
      %v1773 = vpow.pop %v1772
      %v1774 = vsel %vm843, %v1759, 0.0
      %1775 = vadd.xlane.f32.xlu0 %v1774
      %v1776 = vpop.xlane.xlu0 %1775
      %v1777 = vsel %vm843, %v1761, 0.0
      %1778 = vadd.xlane.f32.xlu0 %v1777
      %v1779 = vpop.xlane.xlu0 %1778
      %v1780 = vsel %vm843, %v1763, 0.0
      %1781 = vadd.xlane.f32.xlu0 %v1780
      %v1782 = vpop.xlane.xlu0 %1781
      %v1783 = vsel %vm843, %v1765, 0.0
      %1784 = vadd.xlane.f32.xlu0 %v1783
      %v1785 = vpop.xlane.xlu0 %1784
      %v1786 = vsel %vm843, %v1767, 0.0
      %1787 = vadd.xlane.f32.xlu0 %v1786
      %v1788 = vpop.xlane.xlu0 %1787
      %v1789 = vsel %vm843, %v1769, 0.0
      %1790 = vadd.xlane.f32.xlu0 %v1789
      %v1791 = vpop.xlane.xlu0 %1790
      %v1792 = vsel %vm843, %v1771, 0.0
      %1793 = vadd.xlane.f32.xlu0 %v1792
      %v1794 = vpop.xlane.xlu0 %1793
      %v1795 = vsel %vm843, %v1773, 0.0
      %1796 = vadd.xlane.f32.xlu0 %v1795
      %v1797 = vpop.xlane.xlu0 %1796
      %v1798 = vrcp.pop %v1776
      %v1799 = vrcp.pop %v1779
      %v1800 = vrcp.pop %v1782
      %v1801 = vrcp.pop %v1785
      %v1802 = vrcp.pop %v1788
      %v1803 = vrcp.pop %v1791
      %v1804 = vrcp.pop %v1794
      %v1805 = vrcp.pop %v1797
      %v1806 = vmul.f32 %v1759, %v1798
      %v1807 = vmul.f32 %v1761, %v1799
      %v1808 = vmul.f32 %v1763, %v1800
      %v1809 = vmul.f32 %v1765, %v1801
      %v1810 = vmul.f32 %v1767, %v1802
      %v1811 = vmul.f32 %v1769, %v1803
      %v1812 = vmul.f32 %v1771, %v1804
      %v1813 = vmul.f32 %v1773, %v1805
      %v1814 = vsel %vm843, %v1806, 0.0
      %v1815 = vsel %vm843, %v1807, 0.0
      %v1816 = vadd.f32 %v1814, %v1815
      %v1817 = vsel %vm843, %v1808, 0.0
      %v1818 = vadd.f32 %v1816, %v1817
      %v1819 = vsel %vm843, %v1809, 0.0
      %v1820 = vadd.f32 %v1818, %v1819
      %v1821 = vsel %vm843, %v1810, 0.0
      %v1822 = vadd.f32 %v1820, %v1821
      %v1823 = vsel %vm843, %v1811, 0.0
      %v1824 = vadd.f32 %v1822, %v1823
      %v1825 = vsel %vm843, %v1812, 0.0
      %v1826 = vadd.f32 %v1824, %v1825
      %v1827 = vsel %vm843, %v1813, 0.0
      %v1828 = vadd.f32 %v1826, %v1827
      %1829 = vadd.xlane.f32.xlu0 %v1828
      %v1830 = vpop.xlane.xlu0 %1829
      %v1831 = vrot.slane %v1830, 4
      %v1832 = vadd.f32 %v1830, %v1831
      %v1833 = vrot.slane %v1832, 2
      %v1834 = vadd.f32 %v1832, %v1833
      %v1835 = vrot.slane %v1834, 1
      %v1836 = vadd.f32 %v1834, %v1835
      %s1837 = vtos %v1836
      %v1838 = vrcp.pop 4096.0
      %s1839 = vtos %v1838
      %s1840 = smul.f32 %s1837, %s1839
      %v1841 = vstv %s1840
      %v1842 = vsub.f32 %v1806, %v1841
      %v1843 = vsub.f32 %v1807, %v1841
      %v1844 = vsub.f32 %v1808, %v1841
      %v1845 = vsub.f32 %v1809, %v1841
      %v1846 = vsub.f32 %v1810, %v1841
      %v1847 = vsub.f32 %v1811, %v1841
      %v1848 = vsub.f32 %v1812, %v1841
      %v1849 = vsub.f32 %v1813, %v1841
      %v1850 = vmul.f32 %v1842, %v1842
      %v1851 = vmul.f32 %v1843, %v1843
      %v1852 = vmul.f32 %v1844, %v1844
      %v1853 = vmul.f32 %v1845, %v1845
      %v1854 = vmul.f32 %v1846, %v1846
      %v1855 = vmul.f32 %v1847, %v1847
      %v1856 = vmul.f32 %v1848, %v1848
      %v1857 = vmul.f32 %v1849, %v1849
      %v1858 = vsel %vm843, %v1850, 0.0
      %v1859 = vsel %vm843, %v1851, 0.0
      %v1860 = vadd.f32 %v1858, %v1859
      %v1861 = vsel %vm843, %v1852, 0.0
      %v1862 = vadd.f32 %v1860, %v1861
      %v1863 = vsel %vm843, %v1853, 0.0
      %v1864 = vadd.f32 %v1862, %v1863
      %v1865 = vsel %vm843, %v1854, 0.0
      %v1866 = vadd.f32 %v1864, %v1865
      %v1867 = vsel %vm843, %v1855, 0.0
      %v1868 = vadd.f32 %v1866, %v1867
      %v1869 = vsel %vm843, %v1856, 0.0
      %v1870 = vadd.f32 %v1868, %v1869
      %v1871 = vsel %vm843, %v1857, 0.0
      %v1872 = vadd.f32 %v1870, %v1871
      %1873 = vadd.xlane.f32.xlu0 %v1872
      %v1874 = vpop.xlane.xlu0 %1873
      %v1875 = vrot.slane %v1874, 4
      %v1876 = vadd.f32 %v1874, %v1875
      %v1877 = vrot.slane %v1876, 2
      %v1878 = vadd.f32 %v1876, %v1877
      %v1879 = vrot.slane %v1878, 1
      %v1880 = vadd.f32 %v1878, %v1879
      %s1881 = vtos %v1880
      %v1882 = vrcp.pop 4096.0
      %s1883 = vtos %v1882
      %s1884 = smul.f32 %s1881, %s1883
      %s1885 = sadd.f32 %s1884, 1e-05
      %v1886 = vstv %s1885
      %v1887 = vrsqrt.pop %v1886
      %s1888 = vtos %v1887
      %v1889 = vstv %s1888
      %v1890 = vmul.f32 %v1842, %v1889
      %v1891 = vmul.f32 %v1843, %v1889
      %v1892 = vmul.f32 %v1844, %v1889
      %v1893 = vmul.f32 %v1845, %v1889
      %v1894 = vmul.f32 %v1846, %v1889
      %v1895 = vmul.f32 %v1847, %v1889
      %v1896 = vmul.f32 %v1848, %v1889
      %v1897 = vmul.f32 %v1849, %v1889
      %1899 = vset.pattern.permute.xlu0 0
      %1900 = vperm.xlu0 %1899, %v676
      %v1901 = vpop.permute.xlu0 %1900
      %v1904 = vsel %vm843, %v672, 0
      %v1907 = vsel %vm843, %v1890, 0
      %v1910 = vsel %vm843, %v1891, 0
      %v1913 = vsel %vm843, %v1892, 0
      %v1916 = vsel %vm843, %v1893, 0
      %v1919 = vsel %vm843, %v1894, 0
      %v1922 = vsel %vm843, %v1895, 0
      %v1925 = vsel %vm843, %v1896, 0
      %v1928 = vsel %vm843, %v1897, 0
      %1930 = vmatprep.subr.mxu0 0.0
      %1931 = vmatpush1.xpose.msra.mxu0 0.0
      %1932 = vmatprep.subr.mxu0 0.0
      %1933 = vmatpush1.xpose.msra.mxu0 0.0
      %1934 = vmatprep.subr.mxu0 0.0
      %1935 = vmatpush1.xpose.msra.mxu0 0.0
      %1936 = vmatprep.subr.mxu0 0.0
      %1937 = vmatpush1.xpose.msra.mxu0 0.0
      %1938 = vmatprep.subr.mxu0 0.0
      %1939 = vmatpush1.xpose.msra.mxu0 0.0
      %1940 = vmatprep.subr.mxu0 0.0
      %1941 = vmatpush1.xpose.msra.mxu0 0.0
      %1942 = vmatprep.subr.mxu0 0.0
      %1943 = vmatpush1.xpose.msra.mxu0 0.0
      %1944 = vmatprep.subr.mxu0 0.0
      %1945 = vmatpush1.xpose.msra.mxu0 0.0
      %1946 = vmatprep.subr.mxu0 0.0
      %1947 = vmatpush1.xpose.msra.mxu0 %v1928
      %1948 = vmatprep.subr.mxu0 0.0
      %1949 = vmatpush1.xpose.msra.mxu0 %v1925
      %1950 = vmatprep.subr.mxu0 0.0
      %1951 = vmatpush1.xpose.msra.mxu0 %v1922
      %1952 = vmatprep.subr.mxu0 0.0
      %1953 = vmatpush1.xpose.msra.mxu0 %v1919
      %1954 = vmatprep.subr.mxu0 0.0
      %1955 = vmatpush1.xpose.msra.mxu0 %v1916
      %1956 = vmatprep.subr.mxu0 0.0
      %1957 = vmatpush1.xpose.msra.mxu0 %v1913
      %1958 = vmatprep.subr.mxu0 0.0
      %1959 = vmatpush1.xpose.msra.mxu0 %v1910
      %1960 = vmatprep.subr.mxu0 0.0
      %1961 = vmatpush1.xpose.msra.mxu0 %v1907
      %1962 = vmatprep.subr.mxu0 0.0
      %1963 = vmatpush2.xpose.msra.mxu0 0.0
      %1964 = vmatprep.subr.mxu0 0.0
      %1965 = vmatpush2.xpose.msra.mxu0 0.0
      %1966 = vmatprep.subr.mxu0 0.0
      %1967 = vmatpush2.xpose.msra.mxu0 0.0
      %1968 = vmatprep.subr.mxu0 0.0
      %1969 = vmatpush2.xpose.msra.mxu0 0.0
      %1970 = vmatprep.subr.mxu0 0.0
      %1971 = vmatpush2.xpose.msra.mxu0 0.0
      %1972 = vmatprep.subr.mxu0 0.0
      %1973 = vmatpush2.xpose.msra.mxu0 0.0
      %1974 = vmatprep.subr.mxu0 0.0
      %1975 = vmatpush2.xpose.msra.mxu0 0.0
      %1976 = vmatprep.subr.mxu0 0.0
      %1977 = vmatpush2.xpose.msra.mxu0 0.0
      %1978 = vmatprep.subr.mxu0 0.0
      %1979 = vmatpush2.xpose.msra.mxu0 0.0
      %1980 = vmatprep.subr.mxu0 0.0
      %1981 = vmatpush2.xpose.msra.mxu0 0.0
      %1982 = vmatprep.subr.mxu0 0.0
      %1983 = vmatpush2.xpose.msra.mxu0 0.0
      %1984 = vmatprep.subr.mxu0 0.0
      %1985 = vmatpush2.xpose.msra.mxu0 0.0
      %1986 = vmatprep.subr.mxu0 0.0
      %1987 = vmatpush2.xpose.msra.mxu0 0.0
      %1988 = vmatprep.subr.mxu0 0.0
      %1989 = vmatpush2.xpose.msra.mxu0 0.0
      %1990 = vmatprep.subr.mxu0 0.0
      %1991 = vmatpush2.xpose.msra.mxu0 0.0
      %1992 = vmatprep.subr.mxu0 0.0
      %1993 = vmatpush2.xpose.msra.mxu0 0.0
      %1994 = vmatprep.mubr.f32.mxu0 0.0
      %1995 = vmatmul.mubr.f32.gmra.mxu0 %v1904
      %v1996 = vpop.f32.mrf.mxu0
      %v1997 = vadd.f32 %v1901, %v1996
      %v1998 = vpop.f32.mrf.mxu0
      %1999 = vdwg.mxu0
      %v2000 = vadd.f32 %v1997, %v482
      %2001 = vst.msk [vmem:[#allocation2 + $0x8] sm:$0xf] %vm1119, %v2000
      %v2002 = vrot.slane %v577, 4
      %2004 = vxpose.xlu0.b32.start [1/16] %v2002, 128
      %2005 = vxpose.xlu0.b32.cont [2/16] 0.0, 128
      %2006 = vxpose.xlu0.b32.cont [3/16] 0.0, 128
      %2007 = vxpose.xlu0.b32.cont [4/16] 0.0, 128
      %2008 = vxpose.xlu0.b32.cont [5/16] 0.0, 128
      %2009 = vxpose.xlu0.b32.cont [6/16] 0.0, 128
      %2010 = vxpose.xlu0.b32.cont [7/16] 0.0, 128
      %2011 = vxpose.xlu0.b32.cont [8/16] 0.0, 128
      %2012 = vxpose.xlu0.b32.cont [9/16] 0.0, 128
      %2013 = vxpose.xlu0.b32.cont [10/16] 0.0, 128
      %2014 = vxpose.xlu0.b32.cont [11/16] 0.0, 128
      %2015 = vxpose.xlu0.b32.cont [12/16] 0.0, 128
      %2016 = vxpose.xlu0.b32.cont [13/16] 0.0, 128
      %2017 = vxpose.xlu0.b32.cont [14/16] 0.0, 128
      %2018 = vxpose.xlu0.b32.cont [15/16] 0.0, 128
      %2019 = vxpose.xlu0.b32.end [16/16] 0.0, 128
      %v2020 = vpop.trf.xlu0
      %v2021 = vpop.trf.xlu0
      %v2022 = vpop.trf.xlu0
      %v2023 = vpop.trf.xlu0
      %v2024 = vpop.trf.xlu0
      %v2025 = vpop.trf.xlu0
      %v2026 = vpop.trf.xlu0
      %v2027 = vpop.trf.xlu0
      %v2028 = vpop.trf.xlu0
      %v2029 = vpop.trf.xlu0
      %v2030 = vpop.trf.xlu0
      %v2031 = vpop.trf.xlu0
      %v2032 = vpop.trf.xlu0
      %v2033 = vpop.trf.xlu0
      %v2034 = vpop.trf.xlu0
      %v2035 = vpop.trf.xlu0
      %v2037 = vsel %vm709, %v2020, 0
      %v2040 = vsel %vm709, %v2021, 0
      %v2043 = vsel %vm709, %v2022, 0
      %v2046 = vsel %vm709, %v2023, 0
      %v2049 = vsel %vm709, %v2024, 0
      %v2052 = vsel %vm709, %v2025, 0
      %v2055 = vsel %vm709, %v2026, 0
      %v2058 = vsel %vm709, %v2027, 0
      %v2060 = vsel %vm734, %v2002, 0
      %2062 = vmatprep.subr.mxu0 0.0
      %2063 = vmatpush1.msra.mxu0 0.0
      %2064 = vmatprep.subr.mxu0 0.0
      %2065 = vmatpush1.msra.mxu0 0.0
      %2066 = vmatprep.subr.mxu0 0.0
      %2067 = vmatpush1.msra.mxu0 0.0
      %2068 = vmatprep.subr.mxu0 0.0
      %2069 = vmatpush1.msra.mxu0 0.0
      %2070 = vmatprep.subr.mxu0 0.0
      %2071 = vmatpush1.msra.mxu0 0.0
      %2072 = vmatprep.subr.mxu0 0.0
      %2073 = vmatpush1.msra.mxu0 0.0
      %2074 = vmatprep.subr.mxu0 0.0
      %2075 = vmatpush1.msra.mxu0 0.0
      %2076 = vmatprep.subr.mxu0 0.0
      %2077 = vmatpush1.msra.mxu0 0.0
      %2078 = vmatprep.subr.mxu0 0.0
      %2079 = vmatpush1.msra.mxu0 0.0
      %2080 = vmatprep.subr.mxu0 0.0
      %2081 = vmatpush1.msra.mxu0 0.0
      %2082 = vmatprep.subr.mxu0 0.0
      %2083 = vmatpush1.msra.mxu0 0.0
      %2084 = vmatprep.subr.mxu0 0.0
      %2085 = vmatpush1.msra.mxu0 0.0
      %2086 = vmatprep.subr.mxu0 0.0
      %2087 = vmatpush1.msra.mxu0 0.0
      %2088 = vmatprep.subr.mxu0 0.0
      %2089 = vmatpush1.msra.mxu0 0.0
      %2090 = vmatprep.subr.mxu0 0.0
      %2091 = vmatpush1.msra.mxu0 0.0
      %2092 = vmatprep.subr.mxu0 0.0
      %2093 = vmatpush1.msra.mxu0 %v2060
      %2094 = vmatprep.subr.mxu0 0.0
      %2095 = vmatpush2.msra.mxu0 0.0
      %2096 = vmatprep.subr.mxu0 0.0
      %2097 = vmatpush2.msra.mxu0 0.0
      %2098 = vmatprep.subr.mxu0 0.0
      %2099 = vmatpush2.msra.mxu0 0.0
      %2100 = vmatprep.subr.mxu0 0.0
      %2101 = vmatpush2.msra.mxu0 0.0
      %2102 = vmatprep.subr.mxu0 0.0
      %2103 = vmatpush2.msra.mxu0 0.0
      %2104 = vmatprep.subr.mxu0 0.0
      %2105 = vmatpush2.msra.mxu0 0.0
      %2106 = vmatprep.subr.mxu0 0.0
      %2107 = vmatpush2.msra.mxu0 0.0
      %2108 = vmatprep.subr.mxu0 0.0
      %2109 = vmatpush2.msra.mxu0 0.0
      %2110 = vmatprep.subr.mxu0 0.0
      %2111 = vmatpush2.msra.mxu0 0.0
      %2112 = vmatprep.subr.mxu0 0.0
      %2113 = vmatpush2.msra.mxu0 0.0
      %2114 = vmatprep.subr.mxu0 0.0
      %2115 = vmatpush2.msra.mxu0 0.0
      %2116 = vmatprep.subr.mxu0 0.0
      %2117 = vmatpush2.msra.mxu0 0.0
      %2118 = vmatprep.subr.mxu0 0.0
      %2119 = vmatpush2.msra.mxu0 0.0
      %2120 = vmatprep.subr.mxu0 0.0
      %2121 = vmatpush2.msra.mxu0 0.0
      %2122 = vmatprep.subr.mxu0 0.0
      %2123 = vmatpush2.msra.mxu0 0.0
      %2124 = vmatprep.subr.mxu0 0.0
      %2125 = vmatpush2.msra.mxu0 0.0
      %2126 = vmatprep.mubr.f32.mxu0 0.0
      %2127 = vmatmul.mubr.f32.gmra.mxu0 %v2037
      %v2128 = vpop.f32.mrf.mxu0
      %v2129 = vadd.f32 0.0, %v2128
      %v2130 = vpop.f32.mrf.mxu0
      %2131 = vmatprep.mubr.f32.mxu0 0.0
      %2132 = vmatmul.mubr.f32.gmra.mxu0 %v2040
      %v2133 = vpop.f32.mrf.mxu0
      %v2134 = vadd.f32 0.0, %v2133
      %v2135 = vpop.f32.mrf.mxu0
      %2136 = vmatprep.mubr.f32.mxu0 0.0
      %2137 = vmatmul.mubr.f32.gmra.mxu0 %v2043
      %v2138 = vpop.f32.mrf.mxu0
      %v2139 = vadd.f32 0.0, %v2138
      %v2140 = vpop.f32.mrf.mxu0
      %2141 = vmatprep.mubr.f32.mxu0 0.0
      %2142 = vmatmul.mubr.f32.gmra.mxu0 %v2046
      %v2143 = vpop.f32.mrf.mxu0
      %v2144 = vadd.f32 0.0, %v2143
      %v2145 = vpop.f32.mrf.mxu0
      %2146 = vmatprep.mubr.f32.mxu0 0.0
      %2147 = vmatmul.mubr.f32.gmra.mxu0 %v2049
      %v2148 = vpop.f32.mrf.mxu0
      %v2149 = vadd.f32 0.0, %v2148
      %v2150 = vpop.f32.mrf.mxu0
      %2151 = vmatprep.mubr.f32.mxu0 0.0
      %2152 = vmatmul.mubr.f32.gmra.mxu0 %v2052
      %v2153 = vpop.f32.mrf.mxu0
      %v2154 = vadd.f32 0.0, %v2153
      %v2155 = vpop.f32.mrf.mxu0
      %2156 = vmatprep.mubr.f32.mxu0 0.0
      %2157 = vmatmul.mubr.f32.gmra.mxu0 %v2055
      %v2158 = vpop.f32.mrf.mxu0
      %v2159 = vadd.f32 0.0, %v2158
      %v2160 = vpop.f32.mrf.mxu0
      %2161 = vmatprep.mubr.f32.mxu0 0.0
      %2162 = vmatmul.mubr.f32.gmra.mxu0 %v2058
      %v2163 = vpop.f32.mrf.mxu0
      %v2164 = vadd.f32 0.0, %v2163
      %v2165 = vpop.f32.mrf.mxu0
      %2166 = vdwg.mxu0
      %v2167 = vsel %vm843, %v2129, -inf
      %2168 = vmax.xlane.f32.xlu0 %v2167
      %v2169 = vpop.xlane.xlu0 %2168
      %v2170 = vsel %vm843, %v2134, -inf
      %2171 = vmax.xlane.f32.xlu0 %v2170
      %v2172 = vpop.xlane.xlu0 %2171
      %v2173 = vsel %vm843, %v2139, -inf
      %2174 = vmax.xlane.f32.xlu0 %v2173
      %v2175 = vpop.xlane.xlu0 %2174
      %v2176 = vsel %vm843, %v2144, -inf
      %2177 = vmax.xlane.f32.xlu0 %v2176
      %v2178 = vpop.xlane.xlu0 %2177
      %v2179 = vsel %vm843, %v2149, -inf
      %2180 = vmax.xlane.f32.xlu0 %v2179
      %v2181 = vpop.xlane.xlu0 %2180
      %v2182 = vsel %vm843, %v2154, -inf
      %2183 = vmax.xlane.f32.xlu0 %v2182
      %v2184 = vpop.xlane.xlu0 %2183
      %v2185 = vsel %vm843, %v2159, -inf
      %2186 = vmax.xlane.f32.xlu0 %v2185
      %v2187 = vpop.xlane.xlu0 %2186
      %v2188 = vsel %vm843, %v2164, -inf
      %2189 = vmax.xlane.f32.xlu0 %v2188
      %v2190 = vpop.xlane.xlu0 %2189
      %v2191 = vsub.f32 %v2129, %v2169
      %v2192 = vsub.f32 %v2134, %v2172
      %v2193 = vsub.f32 %v2139, %v2175
      %v2194 = vsub.f32 %v2144, %v2178
      %v2195 = vsub.f32 %v2149, %v2181
      %v2196 = vsub.f32 %v2154, %v2184
      %v2197 = vsub.f32 %v2159, %v2187
      %v2198 = vsub.f32 %v2164, %v2190
      %v2199 = vmul.f32 %v2191, 1.442695
      %v2200 = vpow.pop %v2199
      %v2201 = vmul.f32 %v2192, 1.442695
      %v2202 = vpow.pop %v2201
      %v2203 = vmul.f32 %v2193, 1.442695
      %v2204 = vpow.pop %v2203
      %v2205 = vmul.f32 %v2194, 1.442695
      %v2206 = vpow.pop %v2205
      %v2207 = vmul.f32 %v2195, 1.442695
      %v2208 = vpow.pop %v2207
      %v2209 = vmul.f32 %v2196, 1.442695
      %v2210 = vpow.pop %v2209
      %v2211 = vmul.f32 %v2197, 1.442695
      %v2212 = vpow.pop %v2211
      %v2213 = vmul.f32 %v2198, 1.442695
      %v2214 = vpow.pop %v2213
      %v2215 = vsel %vm843, %v2200, 0.0
      %2216 = vadd.xlane.f32.xlu0 %v2215
      %v2217 = vpop.xlane.xlu0 %2216
      %v2218 = vsel %vm843, %v2202, 0.0
      %2219 = vadd.xlane.f32.xlu0 %v2218
      %v2220 = vpop.xlane.xlu0 %2219
      %v2221 = vsel %vm843, %v2204, 0.0
      %2222 = vadd.xlane.f32.xlu0 %v2221
      %v2223 = vpop.xlane.xlu0 %2222
      %v2224 = vsel %vm843, %v2206, 0.0
      %2225 = vadd.xlane.f32.xlu0 %v2224
      %v2226 = vpop.xlane.xlu0 %2225
      %v2227 = vsel %vm843, %v2208, 0.0
      %2228 = vadd.xlane.f32.xlu0 %v2227
      %v2229 = vpop.xlane.xlu0 %2228
      %v2230 = vsel %vm843, %v2210, 0.0
      %2231 = vadd.xlane.f32.xlu0 %v2230
      %v2232 = vpop.xlane.xlu0 %2231
      %v2233 = vsel %vm843, %v2212, 0.0
      %2234 = vadd.xlane.f32.xlu0 %v2233
      %v2235 = vpop.xlane.xlu0 %2234
      %v2236 = vsel %vm843, %v2214, 0.0
      %2237 = vadd.xlane.f32.xlu0 %v2236
      %v2238 = vpop.xlane.xlu0 %2237
      %v2239 = vrcp.pop %v2217
      %v2240 = vrcp.pop %v2220
      %v2241 = vrcp.pop %v2223
      %v2242 = vrcp.pop %v2226
      %v2243 = vrcp.pop %v2229
      %v2244 = vrcp.pop %v2232
      %v2245 = vrcp.pop %v2235
      %v2246 = vrcp.pop %v2238
      %v2247 = vmul.f32 %v2200, %v2239
      %v2248 = vmul.f32 %v2202, %v2240
      %v2249 = vmul.f32 %v2204, %v2241
      %v2250 = vmul.f32 %v2206, %v2242
      %v2251 = vmul.f32 %v2208, %v2243
      %v2252 = vmul.f32 %v2210, %v2244
      %v2253 = vmul.f32 %v2212, %v2245
      %v2254 = vmul.f32 %v2214, %v2246
      %v2255 = vsel %vm843, %v2247, 0.0
      %v2256 = vsel %vm843, %v2248, 0.0
      %v2257 = vadd.f32 %v2255, %v2256
      %v2258 = vsel %vm843, %v2249, 0.0
      %v2259 = vadd.f32 %v2257, %v2258
      %v2260 = vsel %vm843, %v2250, 0.0
      %v2261 = vadd.f32 %v2259, %v2260
      %v2262 = vsel %vm843, %v2251, 0.0
      %v2263 = vadd.f32 %v2261, %v2262
      %v2264 = vsel %vm843, %v2252, 0.0
      %v2265 = vadd.f32 %v2263, %v2264
      %v2266 = vsel %vm843, %v2253, 0.0
      %v2267 = vadd.f32 %v2265, %v2266
      %v2268 = vsel %vm843, %v2254, 0.0
      %v2269 = vadd.f32 %v2267, %v2268
      %2270 = vadd.xlane.f32.xlu0 %v2269
      %v2271 = vpop.xlane.xlu0 %2270
      %v2272 = vrot.slane %v2271, 4
      %v2273 = vadd.f32 %v2271, %v2272
      %v2274 = vrot.slane %v2273, 2
      %v2275 = vadd.f32 %v2273, %v2274
      %v2276 = vrot.slane %v2275, 1
      %v2277 = vadd.f32 %v2275, %v2276
      %s2278 = vtos %v2277
      %v2279 = vrcp.pop 4096.0
      %s2280 = vtos %v2279
      %s2281 = smul.f32 %s2278, %s2280
      %v2282 = vstv %s2281
      %v2283 = vsub.f32 %v2247, %v2282
      %v2284 = vsub.f32 %v2248, %v2282
      %v2285 = vsub.f32 %v2249, %v2282
      %v2286 = vsub.f32 %v2250, %v2282
      %v2287 = vsub.f32 %v2251, %v2282
      %v2288 = vsub.f32 %v2252, %v2282
      %v2289 = vsub.f32 %v2253, %v2282
      %v2290 = vsub.f32 %v2254, %v2282
      %v2291 = vmul.f32 %v2283, %v2283
      %v2292 = vmul.f32 %v2284, %v2284
      %v2293 = vmul.f32 %v2285, %v2285
      %v2294 = vmul.f32 %v2286, %v2286
      %v2295 = vmul.f32 %v2287, %v2287
      %v2296 = vmul.f32 %v2288, %v2288
      %v2297 = vmul.f32 %v2289, %v2289
      %v2298 = vmul.f32 %v2290, %v2290
      %v2299 = vsel %vm843, %v2291, 0.0
      %v2300 = vsel %vm843, %v2292, 0.0
      %v2301 = vadd.f32 %v2299, %v2300
      %v2302 = vsel %vm843, %v2293, 0.0
      %v2303 = vadd.f32 %v2301, %v2302
      %v2304 = vsel %vm843, %v2294, 0.0
      %v2305 = vadd.f32 %v2303, %v2304
      %v2306 = vsel %vm843, %v2295, 0.0
      %v2307 = vadd.f32 %v2305, %v2306
      %v2308 = vsel %vm843, %v2296, 0.0
      %v2309 = vadd.f32 %v2307, %v2308
      %v2310 = vsel %vm843, %v2297, 0.0
      %v2311 = vadd.f32 %v2309, %v2310
      %v2312 = vsel %vm843, %v2298, 0.0
      %v2313 = vadd.f32 %v2311, %v2312
      %2314 = vadd.xlane.f32.xlu0 %v2313
      %v2315 = vpop.xlane.xlu0 %2314
      %v2316 = vrot.slane %v2315, 4
      %v2317 = vadd.f32 %v2315, %v2316
      %v2318 = vrot.slane %v2317, 2
      %v2319 = vadd.f32 %v2317, %v2318
      %v2320 = vrot.slane %v2319, 1
      %v2321 = vadd.f32 %v2319, %v2320
      %s2322 = vtos %v2321
      %v2323 = vrcp.pop 4096.0
      %s2324 = vtos %v2323
      %s2325 = smul.f32 %s2322, %s2324
      %s2326 = sadd.f32 %s2325, 1e-05
      %v2327 = vstv %s2326
      %v2328 = vrsqrt.pop %v2327
      %s2329 = vtos %v2328
      %v2330 = vstv %s2329
      %v2331 = vmul.f32 %v2283, %v2330
      %v2332 = vmul.f32 %v2284, %v2330
      %v2333 = vmul.f32 %v2285, %v2330
      %v2334 = vmul.f32 %v2286, %v2330
      %v2335 = vmul.f32 %v2287, %v2330
      %v2336 = vmul.f32 %v2288, %v2330
      %v2337 = vmul.f32 %v2289, %v2330
      %v2338 = vmul.f32 %v2290, %v2330
      %v2339 = vrot.slane %v672, 4
      %v2340 = vrot.slane %v1901, 4
      %v2342 = vsel %vm843, %v2339, 0
      %v2345 = vsel %vm843, %v2331, 0
      %v2348 = vsel %vm843, %v2332, 0
      %v2351 = vsel %vm843, %v2333, 0
      %v2354 = vsel %vm843, %v2334, 0
      %v2357 = vsel %vm843, %v2335, 0
      %v2360 = vsel %vm843, %v2336, 0
      %v2363 = vsel %vm843, %v2337, 0
      %v2366 = vsel %vm843, %v2338, 0
      %2368 = vmatprep.subr.mxu0 0.0
      %2369 = vmatpush1.xpose.msra.mxu0 0.0
      %2370 = vmatprep.subr.mxu0 0.0
      %2371 = vmatpush1.xpose.msra.mxu0 0.0
      %2372 = vmatprep.subr.mxu0 0.0
      %2373 = vmatpush1.xpose.msra.mxu0 0.0
      %2374 = vmatprep.subr.mxu0 0.0
      %2375 = vmatpush1.xpose.msra.mxu0 0.0
      %2376 = vmatprep.subr.mxu0 0.0
      %2377 = vmatpush1.xpose.msra.mxu0 0.0
      %2378 = vmatprep.subr.mxu0 0.0
      %2379 = vmatpush1.xpose.msra.mxu0 0.0
      %2380 = vmatprep.subr.mxu0 0.0
      %2381 = vmatpush1.xpose.msra.mxu0 0.0
      %2382 = vmatprep.subr.mxu0 0.0
      %2383 = vmatpush1.xpose.msra.mxu0 0.0
      %2384 = vmatprep.subr.mxu0 0.0
      %2385 = vmatpush1.xpose.msra.mxu0 %v2366
      %2386 = vmatprep.subr.mxu0 0.0
      %2387 = vmatpush1.xpose.msra.mxu0 %v2363
      %2388 = vmatprep.subr.mxu0 0.0
      %2389 = vmatpush1.xpose.msra.mxu0 %v2360
      %2390 = vmatprep.subr.mxu0 0.0
      %2391 = vmatpush1.xpose.msra.mxu0 %v2357
      %2392 = vmatprep.subr.mxu0 0.0
      %2393 = vmatpush1.xpose.msra.mxu0 %v2354
      %2394 = vmatprep.subr.mxu0 0.0
      %2395 = vmatpush1.xpose.msra.mxu0 %v2351
      %2396 = vmatprep.subr.mxu0 0.0
      %2397 = vmatpush1.xpose.msra.mxu0 %v2348
      %2398 = vmatprep.subr.mxu0 0.0
      %2399 = vmatpush1.xpose.msra.mxu0 %v2345
      %2400 = vmatprep.subr.mxu0 0.0
      %2401 = vmatpush2.xpose.msra.mxu0 0.0
      %2402 = vmatprep.subr.mxu0 0.0
      %2403 = vmatpush2.xpose.msra.mxu0 0.0
      %2404 = vmatprep.subr.mxu0 0.0
      %2405 = vmatpush2.xpose.msra.mxu0 0.0
      %2406 = vmatprep.subr.mxu0 0.0
      %2407 = vmatpush2.xpose.msra.mxu0 0.0
      %2408 = vmatprep.subr.mxu0 0.0
      %2409 = vmatpush2.xpose.msra.mxu0 0.0
      %2410 = vmatprep.subr.mxu0 0.0
      %2411 = vmatpush2.xpose.msra.mxu0 0.0
      %2412 = vmatprep.subr.mxu0 0.0
      %2413 = vmatpush2.xpose.msra.mxu0 0.0
      %2414 = vmatprep.subr.mxu0 0.0
      %2415 = vmatpush2.xpose.msra.mxu0 0.0
      %2416 = vmatprep.subr.mxu0 0.0
      %2417 = vmatpush2.xpose.msra.mxu0 0.0
      %2418 = vmatprep.subr.mxu0 0.0
      %2419 = vmatpush2.xpose.msra.mxu0 0.0
      %2420 = vmatprep.subr.mxu0 0.0
      %2421 = vmatpush2.xpose.msra.mxu0 0.0
      %2422 = vmatprep.subr.mxu0 0.0
      %2423 = vmatpush2.xpose.msra.mxu0 0.0
      %2424 = vmatprep.subr.mxu0 0.0
      %2425 = vmatpush2.xpose.msra.mxu0 0.0
      %2426 = vmatprep.subr.mxu0 0.0
      %2427 = vmatpush2.xpose.msra.mxu0 0.0
      %2428 = vmatprep.subr.mxu0 0.0
      %2429 = vmatpush2.xpose.msra.mxu0 0.0
      %2430 = vmatprep.subr.mxu0 0.0
      %2431 = vmatpush2.xpose.msra.mxu0 0.0
      %2432 = vmatprep.mubr.f32.mxu0 0.0
      %2433 = vmatmul.mubr.f32.gmra.mxu0 %v2342
      %v2434 = vpop.f32.mrf.mxu0
      %v2435 = vadd.f32 %v2340, %v2434
      %v2436 = vpop.f32.mrf.mxu0
      %2437 = vdwg.mxu0
      %v2439 = vrot.slane %v482, 4
      %v2441 = vadd.f32 %v2435, %v2439
      %2442 = vst.msk [vmem:[#allocation2 + $0xc] sm:$0xf] %vm1119, %v2441
      %v2443 = vld [vmem:[%s8] sm:$0xff]
      %v2444 = vld [vmem:[%s8 + $0x8] sm:$0xff]
      %v2445 = vld [vmem:[%s8 + $0x10] sm:$0xff]
      %v2446 = vld [vmem:[%s8 + $0x18] sm:$0xff]
      %v2447 = vld [vmem:[#allocation2] sm:$0xff]
      %v2448 = vld [vmem:[#allocation2 + $0x8] sm:$0xff]
      %v2449 = vld [vmem:[%s9] sm:$0xff]
      %v2450 = vld [vmem:[%s9 + $0x8] sm:$0xff]
      %v2451 = vld [vmem:[%s9 + $0x10] sm:$0xff]
      %v2452 = vld [vmem:[%s9 + $0x18] sm:$0xff]
      %v2454 = vsel %vm403, %v2449, 0
      %v2457 = vsel %vm403, %v2450, 0
      %v2460 = vsel %vm403, %v2451, 0
      %v2463 = vsel %vm403, %v2452, 0
      %2465 = vmatprep.subr.mxu0 0.0
      %2466 = vmatpush1.msra.mxu0 0.0
      %2467 = vmatprep.subr.mxu0 0.0
      %2468 = vmatpush1.msra.mxu0 0.0
      %2469 = vmatprep.subr.mxu0 0.0
      %2470 = vmatpush1.msra.mxu0 0.0
      %2471 = vmatprep.subr.mxu0 0.0
      %2472 = vmatpush1.msra.mxu0 0.0
      %2473 = vmatprep.subr.mxu0 0.0
      %2474 = vmatpush1.msra.mxu0 0.0
      %2475 = vmatprep.subr.mxu0 0.0
      %2476 = vmatpush1.msra.mxu0 0.0
      %2477 = vmatprep.subr.mxu0 0.0
      %2478 = vmatpush1.msra.mxu0 0.0
      %2479 = vmatprep.subr.mxu0 0.0
      %2480 = vmatpush1.msra.mxu0 0.0
      %2481 = vmatprep.subr.mxu0 0.0
      %2482 = vmatpush1.msra.mxu0 0.0
      %2483 = vmatprep.subr.mxu0 0.0
      %2484 = vmatpush1.msra.mxu0 0.0
      %2485 = vmatprep.subr.mxu0 0.0
      %2486 = vmatpush1.msra.mxu0 0.0
      %2487 = vmatprep.subr.mxu0 0.0
      %2488 = vmatpush1.msra.mxu0 0.0
      %2489 = vmatprep.subr.mxu0 0.0
      %2490 = vmatpush1.msra.mxu0 0.0
      %2491 = vmatprep.subr.mxu0 0.0
      %2492 = vmatpush1.msra.mxu0 0.0
      %2493 = vmatprep.subr.mxu0 0.0
      %2494 = vmatpush1.msra.mxu0 %v388
      %2495 = vmatprep.subr.mxu0 0.0
      %2496 = vmatpush1.msra.mxu0 %v387
      %2497 = vmatprep.subr.mxu0 0.0
      %2498 = vmatpush2.msra.mxu0 0.0
      %2499 = vmatprep.subr.mxu0 0.0
      %2500 = vmatpush2.msra.mxu0 0.0
      %2501 = vmatprep.subr.mxu0 0.0
      %2502 = vmatpush2.msra.mxu0 0.0
      %2503 = vmatprep.subr.mxu0 0.0
      %2504 = vmatpush2.msra.mxu0 0.0
      %2505 = vmatprep.subr.mxu0 0.0
      %2506 = vmatpush2.msra.mxu0 0.0
      %2507 = vmatprep.subr.mxu0 0.0
      %2508 = vmatpush2.msra.mxu0 0.0
      %2509 = vmatprep.subr.mxu0 0.0
      %2510 = vmatpush2.msra.mxu0 0.0
      %2511 = vmatprep.subr.mxu0 0.0
      %2512 = vmatpush2.msra.mxu0 0.0
      %2513 = vmatprep.subr.mxu0 0.0
      %2514 = vmatpush2.msra.mxu0 0.0
      %2515 = vmatprep.subr.mxu0 0.0
      %2516 = vmatpush2.msra.mxu0 0.0
      %2517 = vmatprep.subr.mxu0 0.0
      %2518 = vmatpush2.msra.mxu0 0.0
      %2519 = vmatprep.subr.mxu0 0.0
      %2520 = vmatpush2.msra.mxu0 0.0
      %2521 = vmatprep.subr.mxu0 0.0
      %2522 = vmatpush2.msra.mxu0 0.0
      %2523 = vmatprep.subr.mxu0 0.0
      %2524 = vmatpush2.msra.mxu0 0.0
      %2525 = vmatprep.subr.mxu0 0.0
      %2526 = vmatpush2.msra.mxu0 0.0
      %2527 = vmatprep.subr.mxu0 0.0
      %2528 = vmatpush2.msra.mxu0 0.0
      %2529 = vmatprep.mubr.f32.mxu0 0.0
      %2530 = vmatmul.mubr.f32.gmra.mxu0 %v2454
      %v2531 = vpop.f32.mrf.mxu0
      %v2532 = vadd.f32 0.0, %v2531
      %v2533 = vpop.f32.mrf.mxu0
      %2534 = vmatprep.mubr.f32.mxu0 0.0
      %2535 = vmatmul.mubr.f32.gmra.mxu0 %v2457
      %v2536 = vpop.f32.mrf.mxu0
      %v2537 = vadd.f32 0.0, %v2536
      %v2538 = vpop.f32.mrf.mxu0
      %2539 = vmatprep.mubr.f32.mxu0 0.0
      %2540 = vmatmul.mubr.f32.gmra.mxu0 %v2460
      %v2541 = vpop.f32.mrf.mxu0
      %v2542 = vadd.f32 0.0, %v2541
      %v2543 = vpop.f32.mrf.mxu0
      %2544 = vmatprep.mubr.f32.mxu0 0.0
      %2545 = vmatmul.mubr.f32.gmra.mxu0 %v2463
      %v2546 = vpop.f32.mrf.mxu0
      %v2547 = vadd.f32 0.0, %v2546
      %v2548 = vpop.f32.mrf.mxu0
      %2549 = vdwg.mxu0
      %v2551 = vsel %vm403, %v2443, 0
      %v2554 = vsel %vm403, %v2444, 0
      %v2557 = vsel %vm403, %v2445, 0
      %v2560 = vsel %vm403, %v2446, 0
      %2562 = vmatprep.subr.mxu0 0.0
      %2563 = vmatpush1.msra.mxu0 0.0
      %2564 = vmatprep.subr.mxu0 0.0
      %2565 = vmatpush1.msra.mxu0 0.0
      %2566 = vmatprep.subr.mxu0 0.0
      %2567 = vmatpush1.msra.mxu0 0.0
      %2568 = vmatprep.subr.mxu0 0.0
      %2569 = vmatpush1.msra.mxu0 0.0
      %2570 = vmatprep.subr.mxu0 0.0
      %2571 = vmatpush1.msra.mxu0 0.0
      %2572 = vmatprep.subr.mxu0 0.0
      %2573 = vmatpush1.msra.mxu0 0.0
      %2574 = vmatprep.subr.mxu0 0.0
      %2575 = vmatpush1.msra.mxu0 0.0
      %2576 = vmatprep.subr.mxu0 0.0
      %2577 = vmatpush1.msra.mxu0 0.0
      %2578 = vmatprep.subr.mxu0 0.0
      %2579 = vmatpush1.msra.mxu0 0.0
      %2580 = vmatprep.subr.mxu0 0.0
      %2581 = vmatpush1.msra.mxu0 0.0
      %2582 = vmatprep.subr.mxu0 0.0
      %2583 = vmatpush1.msra.mxu0 0.0
      %2584 = vmatprep.subr.mxu0 0.0
      %2585 = vmatpush1.msra.mxu0 0.0
      %2586 = vmatprep.subr.mxu0 0.0
      %2587 = vmatpush1.msra.mxu0 0.0
      %2588 = vmatprep.subr.mxu0 0.0
      %2589 = vmatpush1.msra.mxu0 0.0
      %2590 = vmatprep.subr.mxu0 0.0
      %2591 = vmatpush1.msra.mxu0 %v2448
      %2592 = vmatprep.subr.mxu0 0.0
      %2593 = vmatpush1.msra.mxu0 %v2447
      %2594 = vmatprep.subr.mxu0 0.0
      %2595 = vmatpush2.msra.mxu0 0.0
      %2596 = vmatprep.subr.mxu0 0.0
      %2597 = vmatpush2.msra.mxu0 0.0
      %2598 = vmatprep.subr.mxu0 0.0
      %2599 = vmatpush2.msra.mxu0 0.0
      %2600 = vmatprep.subr.mxu0 0.0
      %2601 = vmatpush2.msra.mxu0 0.0
      %2602 = vmatprep.subr.mxu0 0.0
      %2603 = vmatpush2.msra.mxu0 0.0
      %2604 = vmatprep.subr.mxu0 0.0
      %2605 = vmatpush2.msra.mxu0 0.0
      %2606 = vmatprep.subr.mxu0 0.0
      %2607 = vmatpush2.msra.mxu0 0.0
      %2608 = vmatprep.subr.mxu0 0.0
      %2609 = vmatpush2.msra.mxu0 0.0
      %2610 = vmatprep.subr.mxu0 0.0
      %2611 = vmatpush2.msra.mxu0 0.0
      %2612 = vmatprep.subr.mxu0 0.0
      %2613 = vmatpush2.msra.mxu0 0.0
      %2614 = vmatprep.subr.mxu0 0.0
      %2615 = vmatpush2.msra.mxu0 0.0
      %2616 = vmatprep.subr.mxu0 0.0
      %2617 = vmatpush2.msra.mxu0 0.0
      %2618 = vmatprep.subr.mxu0 0.0
      %2619 = vmatpush2.msra.mxu0 0.0
      %2620 = vmatprep.subr.mxu0 0.0
      %2621 = vmatpush2.msra.mxu0 0.0
      %2622 = vmatprep.subr.mxu0 0.0
      %2623 = vmatpush2.msra.mxu0 0.0
      %2624 = vmatprep.subr.mxu0 0.0
      %2625 = vmatpush2.msra.mxu0 0.0
      %2626 = vmatprep.mubr.f32.mxu0 0.0
      %2627 = vmatmul.mubr.f32.gmra.mxu0 %v2551
      %v2628 = vpop.f32.mrf.mxu0
      %v2629 = vadd.f32 %v2532, %v2628
      %v2630 = vpop.f32.mrf.mxu0
      %2631 = vmatprep.mubr.f32.mxu0 0.0
      %2632 = vmatmul.mubr.f32.gmra.mxu0 %v2554
      %v2633 = vpop.f32.mrf.mxu0
      %v2634 = vadd.f32 %v2537, %v2633
      %v2635 = vpop.f32.mrf.mxu0
      %2636 = vmatprep.mubr.f32.mxu0 0.0
      %2637 = vmatmul.mubr.f32.gmra.mxu0 %v2557
      %v2638 = vpop.f32.mrf.mxu0
      %v2639 = vadd.f32 %v2542, %v2638
      %v2640 = vpop.f32.mrf.mxu0
      %2641 = vmatprep.mubr.f32.mxu0 0.0
      %2642 = vmatmul.mubr.f32.gmra.mxu0 %v2560
      %v2643 = vpop.f32.mrf.mxu0
      %v2644 = vadd.f32 %v2547, %v2643
      %v2645 = vpop.f32.mrf.mxu0
      %2646 = vdwg.mxu0
      %v2647 = vld [vmem:[%s10] sm:$0xff]
      %v2648 = vld [vmem:[%s10 + $0x8] sm:$0xff]
      %v2649 = vld [vmem:[%s10 + $0x10] sm:$0xff]
      %v2650 = vld [vmem:[%s10 + $0x18] sm:$0xff]
      %2652 = vset.pattern.permute.xlu0 0
      %2653 = vperm.xlu0 %2652, %v2647
      %v2654 = vpop.permute.xlu0 %2653
      %2657 = vset.pattern.permute.xlu0 0
      %2658 = vperm.xlu0 %2657, %v2648
      %v2659 = vpop.permute.xlu0 %2658
      %2662 = vset.pattern.permute.xlu0 0
      %2663 = vperm.xlu0 %2662, %v2649
      %v2664 = vpop.permute.xlu0 %2663
      %2667 = vset.pattern.permute.xlu0 0
      %2668 = vperm.xlu0 %2667, %v2650
      %v2669 = vpop.permute.xlu0 %2668
      %v2671 = vadd.f32 %v2629, %v2654
      %v2672 = vadd.f32 %v2634, %v2659
      %v2673 = vadd.f32 %v2639, %v2664
      %v2674 = vadd.f32 %v2644, %v2669
      %2675 = vst.msk [vmem:[%s386] sm:$0xff] %vm843, %v2671
      %2676 = vst.msk [vmem:[%s386 + $0x8] sm:$0xff] %vm843, %v2672
      %2677 = vst.msk [vmem:[%s386 + $0x10] sm:$0xff] %vm843, %v2673
      %2678 = vst.msk [vmem:[%s386 + $0x18] sm:$0xff] %vm843, %v2674
      %p2679 = scmp.lt.s32.totalorder %s22, 1
      %s2680 = scalar_select %p2679, %s22, 1
      %s2681 = smul.addr %s2680, 4
      %s2682 = smul.addr %s2681, 8
      %s2683 = scalar_lea.vmem %s11, %s2682
      // Predicated region
      $region65: #{ectb_forward.1} parent=63 // pred_check
        %p2684 = pneg %p276
      $region66: #{ectb_forward.1} parent=63 // pred_check_branch
        %2686 = sbr.rel (%p2684) target = $region68
      $region67: #{ectb_forward.1} parent=63 // pred_region
        _
      $region68: #{ectb_forward.1} parent=63 // pred_fallthru
        _
    $region64: #{ectb_forward.1} parent=5 // pred_fallthru
      _
    %p2687 = scmp.le.s32.totalorder 2, %s17
    // Predicated region
    $region69: #{ectb_forward.1} parent=5 // pred_check
      %p2688 = pneg %p2687
    $region70: #{ectb_forward.1} parent=5 // pred_check_branch
      %2690 = sbr.rel (%p2688) target = $region72
    $region71: #{ectb_forward.1} parent=5 // pred_region
      %s2691 = ssub.s32 %s17, 2
      // Predicated region
      $region73: #{ectb_forward.1} parent=71 // pred_check
        %p2692 = pneg %p282
      $region74: #{ectb_forward.1} parent=71 // pred_check_branch
        %2694 = sbr.rel (%p2692) target = $region76
      $region75: #{ectb_forward.1} parent=71 // pred_region
        %p2695 = scmp.lt.s32.totalorder %s23, 1
        %s2696 = scalar_select %p2695, %s23, 1
        %s2697 = smul.addr %s2696, 4
        %s2698 = smul.addr %s2697, 8
        %s2699 = scalar_lea.vmem %s11, %s2698
      $region76: #{ectb_forward.1} parent=71 // pred_fallthru
        _
    $region72: #{ectb_forward.1} parent=5 // pred_fallthru
      _
  $region6: #{ectb_forward.1} parent=0 // loop_footer
    %s21 = sadd.s32 1, %s17
  $region7: #{ectb_forward.1} parent=0 // loop_footer_branch
    %16 = sbr.rel target = $region3
  $region8: #{ectb_forward.1} parent=0 // loop_exit
    _

</llo_original>
